<compile_context>
chip_gen: v7x
topology: tpu7x:2x2x1
jax: 0.10.0
libtpu: 0.0.40
codegen_flags: <defaults>
</compile_context>

<pallas_src>
import jax
import jax.numpy as jnp
from jax.experimental import pallas as pl
from jax.experimental.pallas import tpu as pltpu

BN_EPS = 1e-5


# ----------------------------------------------------------------------------
# Pallas kernels
# ----------------------------------------------------------------------------
def _stem_kernel(x_ref, w2_ref, b2_ref, w3_ref, b3_ref, w4_ref, b4_ref,
                 o2_ref, o3_ref, o4_ref):
    """Three shared-input 1x1 BN_Conv2d blocks fused into one kernel.

    x is DMA'd from HBM once per row tile; each branch gets its own MXU dot,
    bias add and ReLU, and writes its own lane-dense output (no post-hoc
    channel slicing in XLA).
    """
    x = x_ref[...]                                    # (tm, Cin) bf16
    o2_ref[...] = jnp.maximum(
        jnp.dot(x, w2_ref[...], preferred_element_type=jnp.float32) + b2_ref[...],
        0.0).astype(o2_ref.dtype)
    o3_ref[...] = jnp.maximum(
        jnp.dot(x, w3_ref[...], preferred_element_type=jnp.float32) + b3_ref[...],
        0.0).astype(o3_ref.dtype)
    o4_ref[...] = jnp.maximum(
        jnp.dot(x, w4_ref[...], preferred_element_type=jnp.float32) + b4_ref[...],
        0.0).astype(o4_ref.dtype)


def _conv1x7_7x1_kernel(x_ref, w1_ref, b1_ref, w2_ref, b2_ref, o_ref):
    """Fused BN_Conv2d(1x7, pad (0,3)) -> BN_Conv2d(7x1, pad (3,0)) on one image.

    x_ref : (1, H, W, Cin)   bf16
    w1_ref: (7*Cin, Cmid)    bf16 (BN scale folded, taps stacked along K)
    w2_ref: (7*Cmid, Cout)   bf16
    b1/b2 : (1, Cmid)/(1, Cout) f32
    o_ref : (1, H, W, Cout)  bf16

    The intermediate activation never touches HBM; halos are built with
    VMEM-only zero concatenation; each conv is a single K-stacked MXU dot.
    """
    H, W, Cout = o_ref.shape[1], o_ref.shape[2], o_ref.shape[3]
    Cin = x_ref.shape[3]
    Cmid = b1_ref.shape[1]

    x = x_ref[0]                                       # (H, W, Cin) bf16
    # ---- (1,7) conv: +-3 halo along W built in VMEM, 7 taps stacked along K ----
    zw = jnp.zeros((H, 3, Cin), x.dtype)
    xp = jnp.concatenate([zw, x, zw], axis=1)          # (H, W+6, Cin)
    taps = jnp.concatenate([xp[:, k:k + W, :] for k in range(7)], axis=-1)
    acc1 = jnp.dot(taps.reshape(H * W, 7 * Cin), w1_ref[...],
                   preferred_element_type=jnp.float32)
    mid = jnp.maximum(acc1 + b1_ref[...], 0.0).astype(jnp.bfloat16)
    mid = mid.reshape(H, W, Cmid)                      # stays in VMEM

    # ---- (7,1) conv: +-3 halo along H built in VMEM, 7 taps stacked along K ----
    zh = jnp.zeros((3, W, Cmid), mid.dtype)
    midp = jnp.concatenate([zh, mid, zh], axis=0)      # (H+6, W, Cmid)
    taps2 = jnp.concatenate([midp[k:k + H, :, :] for k in range(7)], axis=-1)
    acc2 = jnp.dot(taps2.reshape(H * W, 7 * Cmid), w2_ref[...],
                   preferred_element_type=jnp.float32)
    y = jnp.maximum(acc2 + b2_ref[...], 0.0).astype(o_ref.dtype)
    o_ref[...] = y.reshape(1, H, W, Cout)


def _pool_conv1x1_kernel(x_ref, w_ref, b_ref, o_ref):
    """AvgPool2d(3,1,1, count_include_pad=True) fused with 1x1 conv + BN + ReLU.

    The pool is linear: a separable 3-tap horizontal + 3-tap vertical sum
    (4 adds instead of 8) with VMEM-only halos; the 1/9 factor is folded into
    the bf16 weights.
    """
    H, W, Cout = o_ref.shape[1], o_ref.shape[2], o_ref.shape[3]
    Cin = x_ref.shape[3]
    x = x_ref[0].astype(jnp.float32)                   # (H, W, Cin)

    zw = jnp.zeros((H, 1, Cin), jnp.float32)
    xpw = jnp.concatenate([zw, x, zw], axis=1)         # (H, W+2, Cin)
    hsum = xpw[:, 0:W, :] + xpw[:, 1:W + 1, :] + xpw[:, 2:W + 2, :]

    zh = jnp.zeros((1, W, Cin), jnp.float32)
    hp = jnp.concatenate([zh, hsum, zh], axis=0)       # (H+2, W, Cin)
    s = hp[0:H] + hp[1:H + 1] + hp[2:H + 2]            # (H, W, Cin)

    cols = s.astype(jnp.bfloat16).reshape(H * W, Cin)
    acc = jnp.dot(cols, w_ref[...], preferred_element_type=jnp.float32)
    y = jnp.maximum(acc + b_ref[...], 0.0).astype(o_ref.dtype)
    o_ref[...] = y.reshape(1, H, W, Cout)


# ----------------------------------------------------------------------------
# Pallas wrappers
# ----------------------------------------------------------------------------
def fused_stem_1x1(x, w2, b2, w3, b3, w4, b4, *, tm=512):
    """Three shared-input 1x1 BN_Conv2d blocks as one row-tiled kernel, 3 outputs."""
    N, H, W, Cin = x.shape
    c2, c3, c4 = w2.shape[1], w3.shape[1], w4.shape[1]
    M = N * H * W
    Mp = pl.cdiv(M, tm) * tm                 # pad M up; never fall back to tm = M
    xf = x.reshape(M, Cin)
    if Mp != M:
        xf = jnp.pad(xf, ((0, Mp - M), (0, 0)))
    outs = pl.pallas_call(
        _stem_kernel,
        out_shape=(jax.ShapeDtypeStruct((Mp, c2), jnp.bfloat16),
                   jax.ShapeDtypeStruct((Mp, c3), jnp.bfloat16),
                   jax.ShapeDtypeStruct((Mp, c4), jnp.bfloat16)),
        grid=(Mp // tm,),
        in_specs=[
            pl.BlockSpec((tm, Cin), lambda i: (i, 0)),
            pl.BlockSpec((Cin, c2), lambda i: (0, 0)),
            pl.BlockSpec((1, c2), lambda i: (0, 0)),
            pl.BlockSpec((Cin, c3), lambda i: (0, 0)),
            pl.BlockSpec((1, c3), lambda i: (0, 0)),
            pl.BlockSpec((Cin, c4), lambda i: (0, 0)),
            pl.BlockSpec((1, c4), lambda i: (0, 0)),
        ],
        out_specs=(pl.BlockSpec((tm, c2), lambda i: (i, 0)),
                   pl.BlockSpec((tm, c3), lambda i: (i, 0)),
                   pl.BlockSpec((tm, c4), lambda i: (i, 0))),
        compiler_params=pltpu.CompilerParams(dimension_semantics=("parallel",)),
    )(xf, w2, b2, w3, b3, w4, b4)
    return tuple(o[:M].reshape(N, H, W, -1) for o in outs)


def conv1x7_then_7x1(x, w1, b1, w2, b2):
    """Fused (1x7) -> (7x1) BN_Conv2d pair; intermediate kept in VMEM."""
    # TODO(synk): for large H/W, tile the H axis with a +-3 element-offset halo
    #             instead of one whole-image block per batch element.
    N, H, W, Cin = x.shape
    Cmid = b1.shape[1]
    Cout = w2.shape[1]
    return pl.pallas_call(
        _conv1x7_7x1_kernel,
        out_shape=jax.ShapeDtypeStruct((N, H, W, Cout), jnp.bfloat16),
        grid=(N,),
        in_specs=[
            pl.BlockSpec((1, H, W, Cin), lambda n: (n, 0, 0, 0)),
            pl.BlockSpec((7 * Cin, Cmid), lambda n: (0, 0)),
            pl.BlockSpec((1, Cmid), lambda n: (0, 0)),
            pl.BlockSpec((7 * Cmid, Cout), lambda n: (0, 0)),
            pl.BlockSpec((1, Cout), lambda n: (0, 0)),
        ],
        out_specs=pl.BlockSpec((1, H, W, Cout), lambda n: (n, 0, 0, 0)),
        compiler_params=pltpu.CompilerParams(dimension_semantics=("parallel",)),
    )(x, w1, b1, w2, b2)


def avgpool3x3_conv1x1(x, w, b):
    """branch1: AvgPool2d(3,1,1) fused with its 1x1 BN_Conv2d."""
    # TODO(synk): tile over H (grid=(N, H//th)) with a +-1 halo for very large images
    #             to restore pipelining when N is small and bound VMEM on v7x.
    N, H, W, Cin = x.shape
    Cout = w.shape[1]
    return pl.pallas_call(
        _pool_conv1x1_kernel,
        out_shape=jax.ShapeDtypeStruct((N, H, W, Cout), jnp.bfloat16),
        grid=(N,),
        in_specs=[
            pl.BlockSpec((1, H, W, Cin), lambda n: (n, 0, 0, 0)),
            pl.BlockSpec((Cin, Cout), lambda n: (0, 0)),
            pl.BlockSpec((1, Cout), lambda n: (0, 0)),
        ],
        out_specs=pl.BlockSpec((1, H, W, Cout), lambda n: (n, 0, 0, 0)),
        compiler_params=pltpu.CompilerParams(dimension_semantics=("parallel",)),
    )(x, w, b)


# ----------------------------------------------------------------------------
# Parameters (synthetic, deterministic; eval-mode BN folded to scale/bias)
# ----------------------------------------------------------------------------
def _make_bn_conv(key, cin, cout, kh, kw):
    k1, k2, k3, k4, k5 = jax.random.split(key, 5)
    w = jax.random.normal(k1, (cout, cin, kh, kw), jnp.float32) * 0.1
    gamma = jax.random.uniform(k2, (cout,), jnp.float32, 0.8, 1.2)
    beta = jax.random.normal(k3, (cout,), jnp.float32) * 0.1
    run_mean = jax.random.normal(k4, (cout,), jnp.float32) * 0.1
    run_var = jax.random.uniform(k5, (cout,), jnp.float32, 0.5, 1.5)
    scale = gamma / jnp.sqrt(run_var + BN_EPS)
    bias = beta - run_mean * scale
    return {"w": w, "scale": scale.reshape(1, cout), "bias": bias.reshape(1, cout)}


def init_params(key, in_channels, b1, b2, b3_n1, b3_n1x7, b3_n7x1,
                b4_n1, b4_n1x7_1, b4_n7x1_1, b4_n1x7_2, b4_n7x1_2):
    ks = jax.random.split(key, 10)
    return {
        "branch1": _make_bn_conv(ks[0], in_channels, b1, 1, 1),
        "branch2": _make_bn_conv(ks[1], in_channels, b2, 1, 1),
        "branch3": [
            _make_bn_conv(ks[2], in_channels, b3_n1, 1, 1),
            _make_bn_conv(ks[3], b3_n1, b3_n1x7, 1, 7),
            _make_bn_conv(ks[4], b3_n1x7, b3_n7x1, 7, 1),
        ],
        "branch4": [
            _make_bn_conv(ks[5], in_channels, b4_n1, 1, 1),
            _make_bn_conv(ks[6], b4_n1, b4_n1x7_1, 1, 7),
            _make_bn_conv(ks[7], b4_n1x7_1, b4_n7x1_1, 7, 1),
            _make_bn_conv(ks[8], b4_n7x1_1, b4_n1x7_2, 1, 7),
            _make_bn_conv(ks[9], b4_n1x7_2, b4_n7x1_2, 7, 1),
        ],
    }


# --- fold BN scale into matmul-layout weights (kernels then only do +bias, ReLU) ----
def _fold_1x1(p):   # (Cout, Cin, 1, 1) -> (Cin, Cout) * scale
    return jnp.transpose(p["w"][:, :, 0, 0], (1, 0)) * p["scale"]


def _fold_1x7(p):   # (Cout, Cin, 1, 7) -> (7, Cin, Cout) * scale, tap-major
    return jnp.transpose(p["w"][:, :, 0, :], (2, 1, 0)) * p["scale"]


def _fold_7x1(p):   # (Cout, Cin, 7, 1) -> (7, Cin, Cout) * scale, tap-major
    return jnp.transpose(p["w"][:, :, :, 0], (2, 1, 0)) * p["scale"]


def build_plan(params):
    """Kernel-ready weights: BN folded in, bf16, taps K-stacked, pairs grouped."""
    def _pair(p_a, p_b, fold_a, fold_b):
        cin_a = p_a["w"].shape[1]
        cmid = p_a["w"].shape[0]
        cout = p_b["w"].shape[0]
        w1 = fold_a(p_a).reshape(7 * cin_a, cmid).astype(jnp.bfloat16)
        w2 = fold_b(p_b).reshape(7 * cmid, cout).astype(jnp.bfloat16)
        return {"w1": w1, "b1": p_a["bias"], "w2": w2, "b2": p_b["bias"]}

    return {
        "stem": {
            "w2": _fold_1x1(params["branch2"]).astype(jnp.bfloat16),
            "b2": params["branch2"]["bias"],
            "w3": _fold_1x1(params["branch3"][0]).astype(jnp.bfloat16),
            "b3": params["branch3"][0]["bias"],
            "w4": _fold_1x1(params["branch4"][0]).astype(jnp.bfloat16),
            "b4": params["branch4"][0]["bias"],
        },
        # branch1: avg-pool's 1/9 folded into the 1x1 weights
        "branch1": {
            "w": (_fold_1x1(params["branch1"]) * (1.0 / 9.0)).astype(jnp.bfloat16),
            "b": params["branch1"]["bias"],
        },
        "b3_pair": _pair(params["branch3"][1], params["branch3"][2], _fold_1x7, _fold_7x1),
        "b4_pair_a": _pair(params["branch4"][1], params["branch4"][2], _fold_1x7, _fold_7x1),
        "b4_pair_b": _pair(params["branch4"][3], params["branch4"][4], _fold_1x7, _fold_7x1),
    }


# ----------------------------------------------------------------------------
# Inception_B forward
# ----------------------------------------------------------------------------
def inception_b_forward(x_nchw, plan):
    # NCHW -> NHWC and a single f32 -> bf16 cast; activations stay bf16 at rest.
    x = jnp.transpose(x_nchw, (0, 2, 3, 1)).astype(jnp.bfloat16)

    # branch2 + branch3[0] + branch4[0]: one fused 1x1 kernel, three direct outputs.
    s = plan["stem"]
    out2, y3, y4 = fused_stem_1x1(x, s["w2"], s["b2"], s["w3"], s["b3"], s["w4"], s["b4"])

    # branch1: AvgPool2d(3,1,1) fused into its 1x1 BN_Conv2d (separable pool sum).
    out1 = avgpool3x3_conv1x1(x, plan["branch1"]["w"], plan["branch1"]["b"])

    # branch3: (fused 1x1) -> [1x7 -> 7x1] fused pair (intermediate stays in VMEM).
    p3 = plan["b3_pair"]
    out3 = conv1x7_then_7x1(y3, p3["w1"], p3["b1"], p3["w2"], p3["b2"])

    # branch4: (fused 1x1) -> [1x7 -> 7x1] -> [1x7 -> 7x1], each pair fused.
    pa, pb = plan["b4_pair_a"], plan["b4_pair_b"]
    y4 = conv1x7_then_7x1(y4, pa["w1"], pa["b1"], pa["w2"], pa["b2"])
    out4 = conv1x7_then_7x1(y4, pb["w1"], pb["b1"], pb["w2"], pb["b2"])

    out = jnp.concatenate([out1, out2, out3, out4], axis=-1)      # torch.cat(dim=1)
    return jnp.transpose(out, (0, 3, 1, 2)).astype(jnp.float32)   # NHWC -> NCHW, f32


if __name__ == "__main__":
    key = jax.random.PRNGKey(0)
    kx, kp = jax.random.split(key)

    # Small shapes consistent with the module: N=2, Cin=4, 16x16 spatial.
    N, Cin, H, W = 2, 4, 16, 16
    widths = dict(b1=8, b2=8, b3_n1=8, b3_n1x7=8, b3_n7x1=8,
                  b4_n1=8, b4_n1x7_1=8, b4_n7x1_1=8, b4_n1x7_2=8, b4_n7x1_2=8)

    x = jax.random.normal(kx, (N, Cin, H, W), jnp.float32)
    params = init_params(kp, in_channels=Cin, **widths)
    plan = build_plan(params)

    out = inception_b_forward(x, plan)
    out = jax.block_until_ready(out)

    c_out = widths["b1"] + widths["b2"] + widths["b3_n7x1"] + widths["b4_n7x1_2"]
    assert out.shape == (N, c_out, H, W), out.shape
    assert out.dtype == jnp.float32
    assert bool(jnp.all(jnp.isfinite(out)))
    print("KERNEL_OK")
</pallas_src>

<mosaic_0001>
module attributes {stable_mosaic.version = 11 : i64} {
  func.func @_stem_kernel(%arg0: i32, %arg1: memref<512x4xbf16, #tpu.memory_space<vmem>>, %arg2: memref<4x8xbf16, #tpu.memory_space<vmem>>, %arg3: memref<1x8xf32, #tpu.memory_space<vmem>>, %arg4: memref<4x8xbf16, #tpu.memory_space<vmem>>, %arg5: memref<1x8xf32, #tpu.memory_space<vmem>>, %arg6: memref<4x8xbf16, #tpu.memory_space<vmem>>, %arg7: memref<1x8xf32, #tpu.memory_space<vmem>>, %arg8: memref<512x8xbf16, #tpu.memory_space<vmem>>, %arg9: memref<512x8xbf16, #tpu.memory_space<vmem>>, %arg10: memref<512x8xbf16, #tpu.memory_space<vmem>>) attributes {dimension_semantics = [#tpu.dimension_semantics<parallel>], iteration_bounds = array<i64: 1>, scalar_prefetch = 0 : i64, scratch_operands = 0 : i64, tpu.core_type = #tpu.core_type<tc>, window_params = [{transform_indices = @transform_0, window_bounds = array<i64: 512, 4>}, {pipeline_mode = #tpu.pipeline_mode<synchronous>, transform_indices = @transform_1, window_bounds = array<i64: 4, 8>}, {pipeline_mode = #tpu.pipeline_mode<synchronous>, transform_indices = @transform_2, window_bounds = array<i64: 1, 8>}, {pipeline_mode = #tpu.pipeline_mode<synchronous>, transform_indices = @transform_3, window_bounds = array<i64: 4, 8>}, {pipeline_mode = #tpu.pipeline_mode<synchronous>, transform_indices = @transform_4, window_bounds = array<i64: 1, 8>}, {pipeline_mode = #tpu.pipeline_mode<synchronous>, transform_indices = @transform_5, window_bounds = array<i64: 4, 8>}, {pipeline_mode = #tpu.pipeline_mode<synchronous>, transform_indices = @transform_6, window_bounds = array<i64: 1, 8>}, {transform_indices = @transform_7, window_bounds = array<i64: 512, 8>}, {transform_indices = @transform_8, window_bounds = array<i64: 512, 8>}, {transform_indices = @transform_9, window_bounds = array<i64: 512, 8>}]} {
    %c0 = arith.constant 0 : index
    %c0_0 = arith.constant 0 : index
    %0 = vector.load %arg1[%c0, %c0_0] : memref<512x4xbf16, #tpu.memory_space<vmem>>, vector<512x4xbf16>
    %c0_1 = arith.constant 0 : index
    %c0_2 = arith.constant 0 : index
    %1 = vector.load %arg2[%c0_1, %c0_2] : memref<4x8xbf16, #tpu.memory_space<vmem>>, vector<4x8xbf16>
    %cst = arith.constant dense<0.000000e+00> : vector<512x8xf32>
    %2 = tpu.matmul %0, %1, %cst {dimension_numbers = #tpu.dot_dimension_numbers<[1], [0], [0], [1], [0, 0, 1, 1], [], []>} : vector<512x4xbf16>, vector<4x8xbf16>, vector<512x8xf32> -> vector<512x8xf32>
    %c0_3 = arith.constant 0 : index
    %c0_4 = arith.constant 0 : index
    %3 = vector.load %arg3[%c0_3, %c0_4] : memref<1x8xf32, #tpu.memory_space<vmem>>, vector<1x8xf32>
    %4 = vector.broadcast %3 : vector<1x8xf32> to vector<512x8xf32>
    %5 = arith.addf %2, %4 : vector<512x8xf32>
    %cst_5 = arith.constant 0.000000e+00 : f32
    %6 = vector.broadcast %cst_5 : f32 to vector<512x8xf32>
    %7 = arith.maximumf %5, %6 : vector<512x8xf32>
    %8 = arith.truncf %7 : vector<512x8xf32> to vector<512x8xbf16>
    %c0_6 = arith.constant 0 : index
    %c0_7 = arith.constant 0 : index
    %9 = vector.load %arg8[%c0_6, %c0_7] : memref<512x8xbf16, #tpu.memory_space<vmem>>, vector<512x8xbf16>
    tpu.vector_store %arg8[%c0_6, %c0_7], %8 {strides = array<i32>} : memref<512x8xbf16, #tpu.memory_space<vmem>>, vector<512x8xbf16>,
    %c0_8 = arith.constant 0 : index
    %c0_9 = arith.constant 0 : index
    %10 = vector.load %arg4[%c0_8, %c0_9] : memref<4x8xbf16, #tpu.memory_space<vmem>>, vector<4x8xbf16>
    %cst_10 = arith.constant dense<0.000000e+00> : vector<512x8xf32>
    %11 = tpu.matmul %0, %10, %cst_10 {dimension_numbers = #tpu.dot_dimension_numbers<[1], [0], [0], [1], [0, 0, 1, 1], [], []>} : vector<512x4xbf16>, vector<4x8xbf16>, vector<512x8xf32> -> vector<512x8xf32>
    %c0_11 = arith.constant 0 : index
    %c0_12 = arith.constant 0 : index
    %12 = vector.load %arg5[%c0_11, %c0_12] : memref<1x8xf32, #tpu.memory_space<vmem>>, vector<1x8xf32>
    %13 = vector.broadcast %12 : vector<1x8xf32> to vector<512x8xf32>
    %14 = arith.addf %11, %13 : vector<512x8xf32>
    %cst_13 = arith.constant 0.000000e+00 : f32
    %15 = vector.broadcast %cst_13 : f32 to vector<512x8xf32>
    %16 = arith.maximumf %14, %15 : vector<512x8xf32>
    %17 = arith.truncf %16 : vector<512x8xf32> to vector<512x8xbf16>
    %c0_14 = arith.constant 0 : index
    %c0_15 = arith.constant 0 : index
    %18 = vector.load %arg9[%c0_14, %c0_15] : memref<512x8xbf16, #tpu.memory_space<vmem>>, vector<512x8xbf16>
    tpu.vector_store %arg9[%c0_14, %c0_15], %17 {strides = array<i32>} : memref<512x8xbf16, #tpu.memory_space<vmem>>, vector<512x8xbf16>,
    %c0_16 = arith.constant 0 : index
    %c0_17 = arith.constant 0 : index
    %19 = vector.load %arg6[%c0_16, %c0_17] : memref<4x8xbf16, #tpu.memory_space<vmem>>, vector<4x8xbf16>
    %cst_18 = arith.constant dense<0.000000e+00> : vector<512x8xf32>
    %20 = tpu.matmul %0, %19, %cst_18 {dimension_numbers = #tpu.dot_dimension_numbers<[1], [0], [0], [1], [0, 0, 1, 1], [], []>} : vector<512x4xbf16>, vector<4x8xbf16>, vector<512x8xf32> -> vector<512x8xf32>
    %c0_19 = arith.constant 0 : index
    %c0_20 = arith.constant 0 : index
    %21 = vector.load %arg7[%c0_19, %c0_20] : memref<1x8xf32, #tpu.memory_space<vmem>>, vector<1x8xf32>
    %22 = vector.broadcast %21 : vector<1x8xf32> to vector<512x8xf32>
    %23 = arith.addf %20, %22 : vector<512x8xf32>
    %cst_21 = arith.constant 0.000000e+00 : f32
    %24 = vector.broadcast %cst_21 : f32 to vector<512x8xf32>
    %25 = arith.maximumf %23, %24 : vector<512x8xf32>
    %26 = arith.truncf %25 : vector<512x8xf32> to vector<512x8xbf16>
    %c0_22 = arith.constant 0 : index
    %c0_23 = arith.constant 0 : index
    %27 = vector.load %arg10[%c0_22, %c0_23] : memref<512x8xbf16, #tpu.memory_space<vmem>>, vector<512x8xbf16>
    tpu.vector_store %arg10[%c0_22, %c0_23], %26 {strides = array<i32>} : memref<512x8xbf16, #tpu.memory_space<vmem>>, vector<512x8xbf16>,
    return
  }
  func.func @transform_0(%arg0: i32) -> (i32, i32) {
    %c0_i32 = arith.constant 0 : i32
    %c0_i32_0 = arith.constant 0 : i32
    return %arg0, %c0_i32 : i32, i32
  }
  func.func @transform_1(%arg0: i32) -> (i32, i32) {
    %c0_i32 = arith.constant 0 : i32
    %c0_i32_0 = arith.constant 0 : i32
    %c0_i32_1 = arith.constant 0 : i32
    return %c0_i32, %c0_i32_0 : i32, i32
  }
  func.func @transform_2(%arg0: i32) -> (i32, i32) {
    %c0_i32 = arith.constant 0 : i32
    %c0_i32_0 = arith.constant 0 : i32
    %c0_i32_1 = arith.constant 0 : i32
    return %c0_i32, %c0_i32_0 : i32, i32
  }
  func.func @transform_3(%arg0: i32) -> (i32, i32) {
    %c0_i32 = arith.constant 0 : i32
    %c0_i32_0 = arith.constant 0 : i32
    %c0_i32_1 = arith.constant 0 : i32
    return %c0_i32, %c0_i32_0 : i32, i32
  }
  func.func @transform_4(%arg0: i32) -> (i32, i32) {
    %c0_i32 = arith.constant 0 : i32
    %c0_i32_0 = arith.constant 0 : i32
    %c0_i32_1 = arith.constant 0 : i32
    return %c0_i32, %c0_i32_0 : i32, i32
  }
  func.func @transform_5(%arg0: i32) -> (i32, i32) {
    %c0_i32 = arith.constant 0 : i32
    %c0_i32_0 = arith.constant 0 : i32
    %c0_i32_1 = arith.constant 0 : i32
    return %c0_i32, %c0_i32_0 : i32, i32
  }
  func.func @transform_6(%arg0: i32) -> (i32, i32) {
    %c0_i32 = arith.constant 0 : i32
    %c0_i32_0 = arith.constant 0 : i32
    %c0_i32_1 = arith.constant 0 : i32
    return %c0_i32, %c0_i32_0 : i32, i32
  }
  func.func @transform_7(%arg0: i32) -> (i32, i32) {
    %c0_i32 = arith.constant 0 : i32
    %c0_i32_0 = arith.constant 0 : i32
    return %arg0, %c0_i32 : i32, i32
  }
  func.func @transform_8(%arg0: i32) -> (i32, i32) {
    %c0_i32 = arith.constant 0 : i32
    %c0_i32_0 = arith.constant 0 : i32
    return %arg0, %c0_i32 : i32, i32
  }
  func.func @transform_9(%arg0: i32) -> (i32, i32) {
    %c0_i32 = arith.constant 0 : i32
    %c0_i32_0 = arith.constant 0 : i32
    return %arg0, %c0_i32 : i32, i32
  }
}

</mosaic_0001>

<llo_original>
// kernel: tpu_custom_call.1
$region0: #{tpu_custom_call.1}
  #allocation0 [shape = 'u32[]', space=smem, size = 0x4, offset = 0x4, fixed_abs, tag = 'smem constant byte address 0x4 - core index']
  #allocation1 [shape = 'u32[144,128]{1,0:T(1,128)}', space=vmem, size = 0x12000, scoped, tag = 'internal scratch']
  %s0 = inlined_call_operand.vmem [shape: bf16[512,4], index: 0, kind: input, shape index: {}]
  %s1 = inlined_call_operand.vmem [shape: bf16[4,8], index: 1, kind: input, shape index: {}]
  %s2 = inlined_call_operand.vmem [shape: f32[1,8], index: 2, kind: input, shape index: {}]
  %s3 = inlined_call_operand.vmem [shape: bf16[4,8], index: 3, kind: input, shape index: {}]
  %s4 = inlined_call_operand.vmem [shape: f32[1,8], index: 4, kind: input, shape index: {}]
  %s5 = inlined_call_operand.vmem [shape: bf16[4,8], index: 5, kind: input, shape index: {}]
  %s6 = inlined_call_operand.vmem [shape: f32[1,8], index: 6, kind: input, shape index: {}]
  %s7 = inlined_call_operand.vmem [shape: bf16[512,8], index: 7, kind: output, shape index: {0}]
  %s8 = inlined_call_operand.vmem [shape: bf16[512,8], index: 8, kind: output, shape index: {1}]
  %s9 = inlined_call_operand.vmem [shape: bf16[512,8], index: 9, kind: output, shape index: {2}]
  %10 = xla_tuple %s7, %s8, %s9
  %s11 = sld [smem:[#allocation0]]
  $region54: #{tpu_custom_call.1} parent=0
    _
  %s13 = ssub.s32 1, %s11
  %s14 = scalar_select 0, %s13, %s11
  // Predicated region
  $region2: #{tpu_custom_call.1} parent=0 // pred_check
    _
  $region3: #{tpu_custom_call.1} parent=0 // pred_check_branch
    %16 = sbr.rel (0) target = $region5
  $region4: #{tpu_custom_call.1} parent=0 // pred_region
    _
  $region5: #{tpu_custom_call.1} parent=0 // pred_fallthru
    _
  // Predicated region
  $region6: #{tpu_custom_call.1} parent=0 // pred_check
    _
  $region7: #{tpu_custom_call.1} parent=0 // pred_check_branch
    %18 = sbr.rel (0) target = $region9
  $region8: #{tpu_custom_call.1} parent=0 // pred_region
    _
  $region9: #{tpu_custom_call.1} parent=0 // pred_fallthru
    _
  // Predicated region
  $region10: #{tpu_custom_call.1} parent=0 // pred_check
    _
  $region11: #{tpu_custom_call.1} parent=0 // pred_check_branch
    %20 = sbr.rel (0) target = $region13
  $region12: #{tpu_custom_call.1} parent=0 // pred_region
    _
  $region13: #{tpu_custom_call.1} parent=0 // pred_fallthru
    _
  // Predicated region
  $region14: #{tpu_custom_call.1} parent=0 // pred_check
    _
  $region15: #{tpu_custom_call.1} parent=0 // pred_check_branch
    %22 = sbr.rel (0) target = $region17
  $region16: #{tpu_custom_call.1} parent=0 // pred_region
    _
  $region17: #{tpu_custom_call.1} parent=0 // pred_fallthru
    _
  // Predicated region
  $region18: #{tpu_custom_call.1} parent=0 // pred_check
    _
  $region19: #{tpu_custom_call.1} parent=0 // pred_check_branch
    %24 = sbr.rel (0) target = $region21
  $region20: #{tpu_custom_call.1} parent=0 // pred_region
    _
  $region21: #{tpu_custom_call.1} parent=0 // pred_fallthru
    _
  // Predicated region
  $region22: #{tpu_custom_call.1} parent=0 // pred_check
    _
  $region23: #{tpu_custom_call.1} parent=0 // pred_check_branch
    %26 = sbr.rel (0) target = $region25
  $region24: #{tpu_custom_call.1} parent=0 // pred_region
    _
  $region25: #{tpu_custom_call.1} parent=0 // pred_fallthru
    _
  // Predicated region
  $region26: #{tpu_custom_call.1} parent=0 // pred_check
    _
  $region27: #{tpu_custom_call.1} parent=0 // pred_check_branch
    %28 = sbr.rel (0) target = $region29
  $region28: #{tpu_custom_call.1} parent=0 // pred_region
    _
  $region29: #{tpu_custom_call.1} parent=0 // pred_fallthru
    _
  %v30 = vld [vmem:[%s0] sm:$0xf]
  %v31 = vld [vmem:[%s0 + $0x4] sm:$0xf]
  %v32 = vld [vmem:[%s0 + $0x8] sm:$0xf]
  %v33 = vld [vmem:[%s0 + $0xc] sm:$0xf]
  %v34 = vld [vmem:[%s0 + $0x10] sm:$0xf]
  %v35 = vld [vmem:[%s0 + $0x14] sm:$0xf]
  %v36 = vld [vmem:[%s0 + $0x18] sm:$0xf]
  %v37 = vld [vmem:[%s0 + $0x1c] sm:$0xf]
  %v38 = vld [vmem:[%s0 + $0x20] sm:$0xf]
  %v39 = vld [vmem:[%s0 + $0x24] sm:$0xf]
  %v40 = vld [vmem:[%s0 + $0x28] sm:$0xf]
  %v41 = vld [vmem:[%s0 + $0x2c] sm:$0xf]
  %v42 = vld [vmem:[%s0 + $0x30] sm:$0xf]
  %v43 = vld [vmem:[%s0 + $0x34] sm:$0xf]
  %v44 = vld [vmem:[%s0 + $0x38] sm:$0xf]
  %v45 = vld [vmem:[%s0 + $0x3c] sm:$0xf]
  %v46 = vld [vmem:[%s0 + $0x40] sm:$0xf]
  %v47 = vld [vmem:[%s0 + $0x44] sm:$0xf]
  %v48 = vld [vmem:[%s0 + $0x48] sm:$0xf]
  %v49 = vld [vmem:[%s0 + $0x4c] sm:$0xf]
  %v50 = vld [vmem:[%s0 + $0x50] sm:$0xf]
  %v51 = vld [vmem:[%s0 + $0x54] sm:$0xf]
  %v52 = vld [vmem:[%s0 + $0x58] sm:$0xf]
  %v53 = vld [vmem:[%s0 + $0x5c] sm:$0xf]
  %v54 = vld [vmem:[%s0 + $0x60] sm:$0xf]
  %v55 = vld [vmem:[%s0 + $0x64] sm:$0xf]
  %v56 = vld [vmem:[%s0 + $0x68] sm:$0xf]
  %v57 = vld [vmem:[%s0 + $0x6c] sm:$0xf]
  %v58 = vld [vmem:[%s0 + $0x70] sm:$0xf]
  %v59 = vld [vmem:[%s0 + $0x74] sm:$0xf]
  %v60 = vld [vmem:[%s0 + $0x78] sm:$0xf]
  %v61 = vld [vmem:[%s0 + $0x7c] sm:$0xf]
  %v62 = vld [vmem:[%s0 + $0x80] sm:$0xf]
  %v63 = vld [vmem:[%s0 + $0x84] sm:$0xf]
  %v64 = vld [vmem:[%s0 + $0x88] sm:$0xf]
  %v65 = vld [vmem:[%s0 + $0x8c] sm:$0xf]
  %v66 = vld [vmem:[%s0 + $0x90] sm:$0xf]
  %v67 = vld [vmem:[%s0 + $0x94] sm:$0xf]
  %v68 = vld [vmem:[%s0 + $0x98] sm:$0xf]
  %v69 = vld [vmem:[%s0 + $0x9c] sm:$0xf]
  %v70 = vld [vmem:[%s0 + $0xa0] sm:$0xf]
  %v71 = vld [vmem:[%s0 + $0xa4] sm:$0xf]
  %v72 = vld [vmem:[%s0 + $0xa8] sm:$0xf]
  %v73 = vld [vmem:[%s0 + $0xac] sm:$0xf]
  %v74 = vld [vmem:[%s0 + $0xb0] sm:$0xf]
  %v75 = vld [vmem:[%s0 + $0xb4] sm:$0xf]
  %v76 = vld [vmem:[%s0 + $0xb8] sm:$0xf]
  %v77 = vld [vmem:[%s0 + $0xbc] sm:$0xf]
  %v78 = vld [vmem:[%s0 + $0xc0] sm:$0xf]
  %v79 = vld [vmem:[%s0 + $0xc4] sm:$0xf]
  %v80 = vld [vmem:[%s0 + $0xc8] sm:$0xf]
  %v81 = vld [vmem:[%s0 + $0xcc] sm:$0xf]
  %v82 = vld [vmem:[%s0 + $0xd0] sm:$0xf]
  %v83 = vld [vmem:[%s0 + $0xd4] sm:$0xf]
  %v84 = vld [vmem:[%s0 + $0xd8] sm:$0xf]
  %v85 = vld [vmem:[%s0 + $0xdc] sm:$0xf]
  %v86 = vld [vmem:[%s0 + $0xe0] sm:$0xf]
  %v87 = vld [vmem:[%s0 + $0xe4] sm:$0xf]
  %v88 = vld [vmem:[%s0 + $0xe8] sm:$0xf]
  %v89 = vld [vmem:[%s0 + $0xec] sm:$0xf]
  %v90 = vld [vmem:[%s0 + $0xf0] sm:$0xf]
  %v91 = vld [vmem:[%s0 + $0xf4] sm:$0xf]
  %v92 = vld [vmem:[%s0 + $0xf8] sm:$0xf]
  %v93 = vld [vmem:[%s0 + $0xfc] sm:$0xf]
  %v94 = vld [vmem:[%s1] sm:$0x3]
  %v95 = vld [vmem:[%s2] sm:$0x1]
  %v97 = vlaneseq
  %v98 = vshrl.u32 %v97, 7
  %v99 = vsub.s32 0, %v98
  %v100 = vrot.slane %v95, %v99
  %v166 = vunpack.c.l.b16 %v30
  %v167 = vunpack.c.l.b16 %v31
  %v168 = vunpack.c.l.b16 %v32
  %v169 = vunpack.c.l.b16 %v33
  %v170 = vunpack.c.l.b16 %v34
  %v171 = vunpack.c.l.b16 %v35
  %v172 = vunpack.c.l.b16 %v36
  %v173 = vunpack.c.l.b16 %v37
  %v174 = vunpack.c.l.b16 %v38
  %v175 = vunpack.c.l.b16 %v39
  %v176 = vunpack.c.l.b16 %v40
  %v177 = vunpack.c.l.b16 %v41
  %v178 = vunpack.c.l.b16 %v42
  %v179 = vunpack.c.l.b16 %v43
  %v180 = vunpack.c.l.b16 %v44
  %v181 = vunpack.c.l.b16 %v45
  %v182 = vunpack.c.l.b16 %v46
  %v183 = vunpack.c.l.b16 %v47
  %v184 = vunpack.c.l.b16 %v48
  %v185 = vunpack.c.l.b16 %v49
  %v186 = vunpack.c.l.b16 %v50
  %v187 = vunpack.c.l.b16 %v51
  %v188 = vunpack.c.l.b16 %v52
  %v189 = vunpack.c.l.b16 %v53
  %v190 = vunpack.c.l.b16 %v54
  %v191 = vunpack.c.l.b16 %v55
  %v192 = vunpack.c.l.b16 %v56
  %v193 = vunpack.c.l.b16 %v57
  %v194 = vunpack.c.l.b16 %v58
  %v195 = vunpack.c.l.b16 %v59
  %v196 = vunpack.c.l.b16 %v60
  %v197 = vunpack.c.l.b16 %v61
  %v198 = vunpack.c.l.b16 %v62
  %v199 = vunpack.c.l.b16 %v63
  %v200 = vunpack.c.l.b16 %v64
  %v201 = vunpack.c.l.b16 %v65
  %v202 = vunpack.c.l.b16 %v66
  %v203 = vunpack.c.l.b16 %v67
  %v204 = vunpack.c.l.b16 %v68
  %v205 = vunpack.c.l.b16 %v69
  %v206 = vunpack.c.l.b16 %v70
  %v207 = vunpack.c.l.b16 %v71
  %v208 = vunpack.c.l.b16 %v72
  %v209 = vunpack.c.l.b16 %v73
  %v210 = vunpack.c.l.b16 %v74
  %v211 = vunpack.c.l.b16 %v75
  %v212 = vunpack.c.l.b16 %v76
  %v213 = vunpack.c.l.b16 %v77
  %v214 = vunpack.c.l.b16 %v78
  %v215 = vunpack.c.l.b16 %v79
  %v216 = vunpack.c.l.b16 %v80
  %v217 = vunpack.c.l.b16 %v81
  %v218 = vunpack.c.l.b16 %v82
  %v219 = vunpack.c.l.b16 %v83
  %v220 = vunpack.c.l.b16 %v84
  %v221 = vunpack.c.l.b16 %v85
  %v222 = vunpack.c.l.b16 %v86
  %v223 = vunpack.c.l.b16 %v87
  %v224 = vunpack.c.l.b16 %v88
  %v225 = vunpack.c.l.b16 %v89
  %v226 = vunpack.c.l.b16 %v90
  %v227 = vunpack.c.l.b16 %v91
  %v228 = vunpack.c.l.b16 %v92
  %v229 = vunpack.c.l.b16 %v93
  %v230 = vpack.c.b16 %v167, %v166
  %v231 = vpack.c.b16 %v169, %v168
  %v232 = vpack.c.b16 %v171, %v170
  %v233 = vpack.c.b16 %v173, %v172
  %v234 = vpack.c.b16 %v175, %v174
  %v235 = vpack.c.b16 %v177, %v176
  %v236 = vpack.c.b16 %v179, %v178
  %v237 = vpack.c.b16 %v181, %v180
  %v238 = vpack.c.b16 %v183, %v182
  %v239 = vpack.c.b16 %v185, %v184
  %v240 = vpack.c.b16 %v187, %v186
  %v241 = vpack.c.b16 %v189, %v188
  %v242 = vpack.c.b16 %v191, %v190
  %v243 = vpack.c.b16 %v193, %v192
  %v244 = vpack.c.b16 %v195, %v194
  %v245 = vpack.c.b16 %v197, %v196
  %v246 = vpack.c.b16 %v199, %v198
  %v247 = vpack.c.b16 %v201, %v200
  %v248 = vpack.c.b16 %v203, %v202
  %v249 = vpack.c.b16 %v205, %v204
  %v250 = vpack.c.b16 %v207, %v206
  %v251 = vpack.c.b16 %v209, %v208
  %v252 = vpack.c.b16 %v211, %v210
  %v253 = vpack.c.b16 %v213, %v212
  %v254 = vpack.c.b16 %v215, %v214
  %v255 = vpack.c.b16 %v217, %v216
  %v256 = vpack.c.b16 %v219, %v218
  %v257 = vpack.c.b16 %v221, %v220
  %v258 = vpack.c.b16 %v223, %v222
  %v259 = vpack.c.b16 %v225, %v224
  %v260 = vpack.c.b16 %v227, %v226
  %v261 = vpack.c.b16 %v229, %v228
  %vm262 = vcmask 31744
  %v264 = vsel %vm262, %v230, 0
  %v267 = vsel %vm262, %v231, 0
  %v270 = vsel %vm262, %v232, 0
  %v273 = vsel %vm262, %v233, 0
  %v276 = vsel %vm262, %v234, 0
  %v279 = vsel %vm262, %v235, 0
  %v282 = vsel %vm262, %v236, 0
  %v285 = vsel %vm262, %v237, 0
  %v288 = vsel %vm262, %v238, 0
  %v291 = vsel %vm262, %v239, 0
  %v294 = vsel %vm262, %v240, 0
  %v297 = vsel %vm262, %v241, 0
  %v300 = vsel %vm262, %v242, 0
  %v303 = vsel %vm262, %v243, 0
  %v306 = vsel %vm262, %v244, 0
  %v309 = vsel %vm262, %v245, 0
  %v312 = vsel %vm262, %v246, 0
  %v315 = vsel %vm262, %v247, 0
  %v318 = vsel %vm262, %v248, 0
  %v321 = vsel %vm262, %v249, 0
  %v324 = vsel %vm262, %v250, 0
  %v327 = vsel %vm262, %v251, 0
  %v330 = vsel %vm262, %v252, 0
  %v333 = vsel %vm262, %v253, 0
  %v336 = vsel %vm262, %v254, 0
  %v339 = vsel %vm262, %v255, 0
  %v342 = vsel %vm262, %v256, 0
  %v345 = vsel %vm262, %v257, 0
  %v348 = vsel %vm262, %v258, 0
  %v351 = vsel %vm262, %v259, 0
  %v354 = vsel %vm262, %v260, 0
  %v357 = vsel %vm262, %v261, 0
  %vm359 = vcmask 1041408
  %v361 = vsel %vm359, %v94, 0
  %363 = vmatprep.subr.bf16.mxu0 0
  %364 = vmatpush1.bf16.msra.mxu0 %v361
  %365 = vmatprep.subr.bf16.mxu0 0
  %366 = vmatpush1.bf16.msra.mxu0 0
  %367 = vmatprep.subr.bf16.mxu0 0
  %368 = vmatpush1.bf16.msra.mxu0 0
  %369 = vmatprep.subr.bf16.mxu0 0
  %370 = vmatpush1.bf16.msra.mxu0 0
  %371 = vmatprep.subr.bf16.mxu0 0
  %372 = vmatpush1.bf16.msra.mxu0 0
  %373 = vmatprep.subr.bf16.mxu0 0
  %374 = vmatpush1.bf16.msra.mxu0 0
  %375 = vmatprep.subr.bf16.mxu0 0
  %376 = vmatpush1.bf16.msra.mxu0 0
  %377 = vmatprep.subr.bf16.mxu0 0
  %378 = vmatpush1.bf16.msra.mxu0 0
  %379 = vmatprep.subr.bf16.mxu0 0
  %380 = vmatpush1.bf16.msra.mxu0 0
  %381 = vmatprep.subr.bf16.mxu0 0
  %382 = vmatpush1.bf16.msra.mxu0 0
  %383 = vmatprep.subr.bf16.mxu0 0
  %384 = vmatpush1.bf16.msra.mxu0 0
  %385 = vmatprep.subr.bf16.mxu0 0
  %386 = vmatpush1.bf16.msra.mxu0 0
  %387 = vmatprep.subr.bf16.mxu0 0
  %388 = vmatpush1.bf16.msra.mxu0 0
  %389 = vmatprep.subr.bf16.mxu0 0
  %390 = vmatpush1.bf16.msra.mxu0 0
  %391 = vmatprep.subr.bf16.mxu0 0
  %392 = vmatpush1.bf16.msra.mxu0 0
  %393 = vmatprep.subr.bf16.mxu0 0
  %394 = vmatpush1.bf16.msra.mxu0 0
  %395 = vmatprep.mubr.bf16.mxu0 0
  %396 = vmatmul.mubr.bf16.gmra.mrb[0].mxu0 %v264
  %v397 = vpop.f32.mrb[0].mxu0
  %v398 = vadd.f32 %v100, %v397
  %v399 = vpop.f32.mrb[0].mxu0
  %v400 = vpop.f32.mrb[0].mxu0
  %v401 = vadd.f32 %v100, %v400
  %v402 = vpop.f32.mrb[0].mxu0
  %403 = vmatprep.mubr.bf16.mxu0 0
  %404 = vmatmul.mubr.bf16.gmra.mrb[0].mxu0 %v267
  %v405 = vpop.f32.mrb[0].mxu0
  %v406 = vadd.f32 %v100, %v405
  %v407 = vpop.f32.mrb[0].mxu0
  %v408 = vpop.f32.mrb[0].mxu0
  %v409 = vadd.f32 %v100, %v408
  %v410 = vpop.f32.mrb[0].mxu0
  %411 = vmatprep.mubr.bf16.mxu0 0
  %412 = vmatmul.mubr.bf16.gmra.mrb[0].mxu0 %v270
  %v413 = vpop.f32.mrb[0].mxu0
  %v414 = vadd.f32 %v100, %v413
  %v415 = vpop.f32.mrb[0].mxu0
  %v416 = vpop.f32.mrb[0].mxu0
  %v417 = vadd.f32 %v100, %v416
  %v418 = vpop.f32.mrb[0].mxu0
  %419 = vmatprep.mubr.bf16.mxu0 0
  %420 = vmatmul.mubr.bf16.gmra.mrb[0].mxu0 %v273
  %v421 = vpop.f32.mrb[0].mxu0
  %v422 = vadd.f32 %v100, %v421
  %v423 = vpop.f32.mrb[0].mxu0
  %v424 = vpop.f32.mrb[0].mxu0
  %v425 = vadd.f32 %v100, %v424
  %v426 = vpop.f32.mrb[0].mxu0
  %427 = vmatprep.mubr.bf16.mxu0 0
  %428 = vmatmul.mubr.bf16.gmra.mrb[0].mxu0 %v276
  %v429 = vpop.f32.mrb[0].mxu0
  %v430 = vadd.f32 %v100, %v429
  %v431 = vpop.f32.mrb[0].mxu0
  %v432 = vpop.f32.mrb[0].mxu0
  %v433 = vadd.f32 %v100, %v432
  %v434 = vpop.f32.mrb[0].mxu0
  %435 = vmatprep.mubr.bf16.mxu0 0
  %436 = vmatmul.mubr.bf16.gmra.mrb[0].mxu0 %v279
  %v437 = vpop.f32.mrb[0].mxu0
  %v438 = vadd.f32 %v100, %v437
  %v439 = vpop.f32.mrb[0].mxu0
  %v440 = vpop.f32.mrb[0].mxu0
  %v441 = vadd.f32 %v100, %v440
  %v442 = vpop.f32.mrb[0].mxu0
  %443 = vmatprep.mubr.bf16.mxu0 0
  %444 = vmatmul.mubr.bf16.gmra.mrb[0].mxu0 %v282
  %v445 = vpop.f32.mrb[0].mxu0
  %v446 = vadd.f32 %v100, %v445
  %v447 = vpop.f32.mrb[0].mxu0
  %v448 = vpop.f32.mrb[0].mxu0
  %v449 = vadd.f32 %v100, %v448
  %v450 = vpop.f32.mrb[0].mxu0
  %451 = vmatprep.mubr.bf16.mxu0 0
  %452 = vmatmul.mubr.bf16.gmra.mrb[0].mxu0 %v285
  %v453 = vpop.f32.mrb[0].mxu0
  %v454 = vadd.f32 %v100, %v453
  %v455 = vpop.f32.mrb[0].mxu0
  %v456 = vpop.f32.mrb[0].mxu0
  %v457 = vadd.f32 %v100, %v456
  %v458 = vpop.f32.mrb[0].mxu0
  %459 = vmatprep.mubr.bf16.mxu0 0
  %460 = vmatmul.mubr.bf16.gmra.mrb[0].mxu0 %v288
  %v461 = vpop.f32.mrb[0].mxu0
  %v462 = vadd.f32 %v100, %v461
  %v463 = vpop.f32.mrb[0].mxu0
  %v464 = vpop.f32.mrb[0].mxu0
  %v465 = vadd.f32 %v100, %v464
  %v466 = vpop.f32.mrb[0].mxu0
  %467 = vmatprep.mubr.bf16.mxu0 0
  %468 = vmatmul.mubr.bf16.gmra.mrb[0].mxu0 %v291
  %v469 = vpop.f32.mrb[0].mxu0
  %v470 = vadd.f32 %v100, %v469
  %v471 = vpop.f32.mrb[0].mxu0
  %v472 = vpop.f32.mrb[0].mxu0
  %v473 = vadd.f32 %v100, %v472
  %v474 = vpop.f32.mrb[0].mxu0
  %475 = vmatprep.mubr.bf16.mxu0 0
  %476 = vmatmul.mubr.bf16.gmra.mrb[0].mxu0 %v294
  %v477 = vpop.f32.mrb[0].mxu0
  %v478 = vadd.f32 %v100, %v477
  %v479 = vpop.f32.mrb[0].mxu0
  %v480 = vpop.f32.mrb[0].mxu0
  %v481 = vadd.f32 %v100, %v480
  %v482 = vpop.f32.mrb[0].mxu0
  %483 = vmatprep.mubr.bf16.mxu0 0
  %484 = vmatmul.mubr.bf16.gmra.mrb[0].mxu0 %v297
  %v485 = vpop.f32.mrb[0].mxu0
  %v486 = vadd.f32 %v100, %v485
  %v487 = vpop.f32.mrb[0].mxu0
  %v488 = vpop.f32.mrb[0].mxu0
  %v489 = vadd.f32 %v100, %v488
  %v490 = vpop.f32.mrb[0].mxu0
  %491 = vmatprep.mubr.bf16.mxu0 0
  %492 = vmatmul.mubr.bf16.gmra.mrb[0].mxu0 %v300
  %v493 = vpop.f32.mrb[0].mxu0
  %v494 = vadd.f32 %v100, %v493
  %v495 = vpop.f32.mrb[0].mxu0
  %v496 = vpop.f32.mrb[0].mxu0
  %v497 = vadd.f32 %v100, %v496
  %v498 = vpop.f32.mrb[0].mxu0
  %499 = vmatprep.mubr.bf16.mxu0 0
  %500 = vmatmul.mubr.bf16.gmra.mrb[0].mxu0 %v303
  %v501 = vpop.f32.mrb[0].mxu0
  %v502 = vadd.f32 %v100, %v501
  %v503 = vpop.f32.mrb[0].mxu0
  %v504 = vpop.f32.mrb[0].mxu0
  %v505 = vadd.f32 %v100, %v504
  %v506 = vpop.f32.mrb[0].mxu0
  %507 = vmatprep.mubr.bf16.mxu0 0
  %508 = vmatmul.mubr.bf16.gmra.mrb[0].mxu0 %v306
  %v509 = vpop.f32.mrb[0].mxu0
  %v510 = vadd.f32 %v100, %v509
  %v511 = vpop.f32.mrb[0].mxu0
  %v512 = vpop.f32.mrb[0].mxu0
  %v513 = vadd.f32 %v100, %v512
  %v514 = vpop.f32.mrb[0].mxu0
  %515 = vmatprep.mubr.bf16.mxu0 0
  %516 = vmatmul.mubr.bf16.gmra.mrb[0].mxu0 %v309
  %v517 = vpop.f32.mrb[0].mxu0
  %v518 = vadd.f32 %v100, %v517
  %v519 = vpop.f32.mrb[0].mxu0
  %v520 = vpop.f32.mrb[0].mxu0
  %v521 = vadd.f32 %v100, %v520
  %v522 = vpop.f32.mrb[0].mxu0
  %523 = vmatprep.mubr.bf16.mxu0 0
  %524 = vmatmul.mubr.bf16.gmra.mrb[0].mxu0 %v312
  %v525 = vpop.f32.mrb[0].mxu0
  %v526 = vadd.f32 %v100, %v525
  %v527 = vpop.f32.mrb[0].mxu0
  %v528 = vpop.f32.mrb[0].mxu0
  %v529 = vadd.f32 %v100, %v528
  %v530 = vpop.f32.mrb[0].mxu0
  %531 = vmatprep.mubr.bf16.mxu0 0
  %532 = vmatmul.mubr.bf16.gmra.mrb[0].mxu0 %v315
  %v533 = vpop.f32.mrb[0].mxu0
  %v534 = vadd.f32 %v100, %v533
  %v535 = vpop.f32.mrb[0].mxu0
  %v536 = vpop.f32.mrb[0].mxu0
  %v537 = vadd.f32 %v100, %v536
  %v538 = vpop.f32.mrb[0].mxu0
  %539 = vmatprep.mubr.bf16.mxu0 0
  %540 = vmatmul.mubr.bf16.gmra.mrb[0].mxu0 %v318
  %v541 = vpop.f32.mrb[0].mxu0
  %v542 = vadd.f32 %v100, %v541
  %v543 = vpop.f32.mrb[0].mxu0
  %v544 = vpop.f32.mrb[0].mxu0
  %v545 = vadd.f32 %v100, %v544
  %v546 = vpop.f32.mrb[0].mxu0
  %547 = vmatprep.mubr.bf16.mxu0 0
  %548 = vmatmul.mubr.bf16.gmra.mrb[0].mxu0 %v321
  %v549 = vpop.f32.mrb[0].mxu0
  %v550 = vadd.f32 %v100, %v549
  %v551 = vpop.f32.mrb[0].mxu0
  %v552 = vpop.f32.mrb[0].mxu0
  %v553 = vadd.f32 %v100, %v552
  %v554 = vpop.f32.mrb[0].mxu0
  %555 = vmatprep.mubr.bf16.mxu0 0
  %556 = vmatmul.mubr.bf16.gmra.mrb[0].mxu0 %v324
  %v557 = vpop.f32.mrb[0].mxu0
  %v558 = vadd.f32 %v100, %v557
  %v559 = vpop.f32.mrb[0].mxu0
  %v560 = vpop.f32.mrb[0].mxu0
  %v561 = vadd.f32 %v100, %v560
  %v562 = vpop.f32.mrb[0].mxu0
  %563 = vmatprep.mubr.bf16.mxu0 0
  %564 = vmatmul.mubr.bf16.gmra.mrb[0].mxu0 %v327
  %v565 = vpop.f32.mrb[0].mxu0
  %v566 = vadd.f32 %v100, %v565
  %v567 = vpop.f32.mrb[0].mxu0
  %v568 = vpop.f32.mrb[0].mxu0
  %v569 = vadd.f32 %v100, %v568
  %v570 = vpop.f32.mrb[0].mxu0
  %571 = vmatprep.mubr.bf16.mxu0 0
  %572 = vmatmul.mubr.bf16.gmra.mrb[0].mxu0 %v330
  %v573 = vpop.f32.mrb[0].mxu0
  %v574 = vadd.f32 %v100, %v573
  %v575 = vpop.f32.mrb[0].mxu0
  %v576 = vpop.f32.mrb[0].mxu0
  %v577 = vadd.f32 %v100, %v576
  %v578 = vpop.f32.mrb[0].mxu0
  %579 = vmatprep.mubr.bf16.mxu0 0
  %580 = vmatmul.mubr.bf16.gmra.mrb[0].mxu0 %v333
  %v581 = vpop.f32.mrb[0].mxu0
  %v582 = vadd.f32 %v100, %v581
  %v583 = vpop.f32.mrb[0].mxu0
  %v584 = vpop.f32.mrb[0].mxu0
  %v585 = vadd.f32 %v100, %v584
  %v586 = vpop.f32.mrb[0].mxu0
  %587 = vmatprep.mubr.bf16.mxu0 0
  %588 = vmatmul.mubr.bf16.gmra.mrb[0].mxu0 %v336
  %v589 = vpop.f32.mrb[0].mxu0
  %v590 = vadd.f32 %v100, %v589
  %v591 = vpop.f32.mrb[0].mxu0
  %v592 = vpop.f32.mrb[0].mxu0
  %v593 = vadd.f32 %v100, %v592
  %v594 = vpop.f32.mrb[0].mxu0
  %595 = vmatprep.mubr.bf16.mxu0 0
  %596 = vmatmul.mubr.bf16.gmra.mrb[0].mxu0 %v339
  %v597 = vpop.f32.mrb[0].mxu0
  %v598 = vadd.f32 %v100, %v597
  %v599 = vpop.f32.mrb[0].mxu0
  %v600 = vpop.f32.mrb[0].mxu0
  %v601 = vadd.f32 %v100, %v600
  %v602 = vpop.f32.mrb[0].mxu0
  %603 = vmatprep.mubr.bf16.mxu0 0
  %604 = vmatmul.mubr.bf16.gmra.mrb[0].mxu0 %v342
  %v605 = vpop.f32.mrb[0].mxu0
  %v606 = vadd.f32 %v100, %v605
  %v607 = vpop.f32.mrb[0].mxu0
  %v608 = vpop.f32.mrb[0].mxu0
  %v609 = vadd.f32 %v100, %v608
  %v610 = vpop.f32.mrb[0].mxu0
  %611 = vmatprep.mubr.bf16.mxu0 0
  %612 = vmatmul.mubr.bf16.gmra.mrb[0].mxu0 %v345
  %v613 = vpop.f32.mrb[0].mxu0
  %v614 = vadd.f32 %v100, %v613
  %v615 = vpop.f32.mrb[0].mxu0
  %v616 = vpop.f32.mrb[0].mxu0
  %v617 = vadd.f32 %v100, %v616
  %v618 = vpop.f32.mrb[0].mxu0
  %619 = vmatprep.mubr.bf16.mxu0 0
  %620 = vmatmul.mubr.bf16.gmra.mrb[0].mxu0 %v348
  %v621 = vpop.f32.mrb[0].mxu0
  %v622 = vadd.f32 %v100, %v621
  %v623 = vpop.f32.mrb[0].mxu0
  %v624 = vpop.f32.mrb[0].mxu0
  %v625 = vadd.f32 %v100, %v624
  %v626 = vpop.f32.mrb[0].mxu0
  %627 = vmatprep.mubr.bf16.mxu0 0
  %628 = vmatmul.mubr.bf16.gmra.mrb[0].mxu0 %v351
  %v629 = vpop.f32.mrb[0].mxu0
  %v630 = vadd.f32 %v100, %v629
  %v631 = vpop.f32.mrb[0].mxu0
  %v632 = vpop.f32.mrb[0].mxu0
  %v633 = vadd.f32 %v100, %v632
  %v634 = vpop.f32.mrb[0].mxu0
  %635 = vmatprep.mubr.bf16.mxu0 0
  %636 = vmatmul.mubr.bf16.gmra.mrb[0].mxu0 %v354
  %v637 = vpop.f32.mrb[0].mxu0
  %v638 = vadd.f32 %v100, %v637
  %v639 = vpop.f32.mrb[0].mxu0
  %v640 = vpop.f32.mrb[0].mxu0
  %v641 = vadd.f32 %v100, %v640
  %v642 = vpop.f32.mrb[0].mxu0
  %643 = vmatprep.mubr.bf16.mxu0 0
  %644 = vmatmul.mubr.bf16.gmra.mrb[0].mxu0 %v357
  %v645 = vpop.f32.mrb[0].mxu0
  %v646 = vadd.f32 %v100, %v645
  %v647 = vpop.f32.mrb[0].mxu0
  %v648 = vpop.f32.mrb[0].mxu0
  %v649 = vadd.f32 %v100, %v648
  %v650 = vpop.f32.mrb[0].mxu0
  %651 = vdwg.mxu0
  %v652 = vmax.f32 %v398, 0.0
  %v653 = vmax.f32 %v401, 0.0
  %v654 = vmax.f32 %v406, 0.0
  %v655 = vmax.f32 %v409, 0.0
  %v656 = vmax.f32 %v414, 0.0
  %v657 = vmax.f32 %v417, 0.0
  %v658 = vmax.f32 %v422, 0.0
  %v659 = vmax.f32 %v425, 0.0
  %v660 = vmax.f32 %v430, 0.0
  %v661 = vmax.f32 %v433, 0.0
  %v662 = vmax.f32 %v438, 0.0
  %v663 = vmax.f32 %v441, 0.0
  %v664 = vmax.f32 %v446, 0.0
  %v665 = vmax.f32 %v449, 0.0
  %v666 = vmax.f32 %v454, 0.0
  %v667 = vmax.f32 %v457, 0.0
  %v668 = vmax.f32 %v462, 0.0
  %v669 = vmax.f32 %v465, 0.0
  %v670 = vmax.f32 %v470, 0.0
  %v671 = vmax.f32 %v473, 0.0
  %v672 = vmax.f32 %v478, 0.0
  %v673 = vmax.f32 %v481, 0.0
  %v674 = vmax.f32 %v486, 0.0
  %v675 = vmax.f32 %v489, 0.0
  %v676 = vmax.f32 %v494, 0.0
  %v677 = vmax.f32 %v497, 0.0
  %v678 = vmax.f32 %v502, 0.0
  %v679 = vmax.f32 %v505, 0.0
  %v680 = vmax.f32 %v510, 0.0
  %v681 = vmax.f32 %v513, 0.0
  %v682 = vmax.f32 %v518, 0.0
  %v683 = vmax.f32 %v521, 0.0
  %v684 = vmax.f32 %v526, 0.0
  %v685 = vmax.f32 %v529, 0.0
  %v686 = vmax.f32 %v534, 0.0
  %v687 = vmax.f32 %v537, 0.0
  %v688 = vmax.f32 %v542, 0.0
  %v689 = vmax.f32 %v545, 0.0
  %v690 = vmax.f32 %v550, 0.0
  %v691 = vmax.f32 %v553, 0.0
  %v692 = vmax.f32 %v558, 0.0
  %v693 = vmax.f32 %v561, 0.0
  %v694 = vmax.f32 %v566, 0.0
  %v695 = vmax.f32 %v569, 0.0
  %v696 = vmax.f32 %v574, 0.0
  %v697 = vmax.f32 %v577, 0.0
  %v698 = vmax.f32 %v582, 0.0
  %v699 = vmax.f32 %v585, 0.0
  %v700 = vmax.f32 %v590, 0.0
  %v701 = vmax.f32 %v593, 0.0
  %v702 = vmax.f32 %v598, 0.0
  %v703 = vmax.f32 %v601, 0.0
  %v704 = vmax.f32 %v606, 0.0
  %v705 = vmax.f32 %v609, 0.0
  %v706 = vmax.f32 %v614, 0.0
  %v707 = vmax.f32 %v617, 0.0
  %v708 = vmax.f32 %v622, 0.0
  %v709 = vmax.f32 %v625, 0.0
  %v710 = vmax.f32 %v630, 0.0
  %v711 = vmax.f32 %v633, 0.0
  %v712 = vmax.f32 %v638, 0.0
  %v713 = vmax.f32 %v641, 0.0
  %v714 = vmax.f32 %v646, 0.0
  %v715 = vmax.f32 %v649, 0.0
  %v716 = vpack.c.bf16 %v653, %v652
  %v717 = vpack.c.bf16 %v655, %v654
  %v718 = vpack.c.bf16 %v657, %v656
  %v719 = vpack.c.bf16 %v659, %v658
  %v720 = vpack.c.bf16 %v661, %v660
  %v721 = vpack.c.bf16 %v663, %v662
  %v722 = vpack.c.bf16 %v665, %v664
  %v723 = vpack.c.bf16 %v667, %v666
  %v724 = vpack.c.bf16 %v669, %v668
  %v725 = vpack.c.bf16 %v671, %v670
  %v726 = vpack.c.bf16 %v673, %v672
  %v727 = vpack.c.bf16 %v675, %v674
  %v728 = vpack.c.bf16 %v677, %v676
  %v729 = vpack.c.bf16 %v679, %v678
  %v730 = vpack.c.bf16 %v681, %v680
  %v731 = vpack.c.bf16 %v683, %v682
  %v732 = vpack.c.bf16 %v685, %v684
  %v733 = vpack.c.bf16 %v687, %v686
  %v734 = vpack.c.bf16 %v689, %v688
  %v735 = vpack.c.bf16 %v691, %v690
  %v736 = vpack.c.bf16 %v693, %v692
  %v737 = vpack.c.bf16 %v695, %v694
  %v738 = vpack.c.bf16 %v697, %v696
  %v739 = vpack.c.bf16 %v699, %v698
  %v740 = vpack.c.bf16 %v701, %v700
  %v741 = vpack.c.bf16 %v703, %v702
  %v742 = vpack.c.bf16 %v705, %v704
  %v743 = vpack.c.bf16 %v707, %v706
  %v744 = vpack.c.bf16 %v709, %v708
  %v745 = vpack.c.bf16 %v711, %v710
  %v746 = vpack.c.bf16 %v713, %v712
  %v747 = vpack.c.bf16 %v715, %v714
  %v780 = vunpack.c.l.b16 %v716
  %v781 = vunpack.c.h.b16 %v716
  %v782 = vunpack.c.l.b16 %v717
  %v783 = vunpack.c.h.b16 %v717
  %v784 = vunpack.c.l.b16 %v718
  %v785 = vunpack.c.h.b16 %v718
  %v786 = vunpack.c.l.b16 %v719
  %v787 = vunpack.c.h.b16 %v719
  %v788 = vunpack.c.l.b16 %v720
  %v789 = vunpack.c.h.b16 %v720
  %v790 = vunpack.c.l.b16 %v721
  %v791 = vunpack.c.h.b16 %v721
  %v792 = vunpack.c.l.b16 %v722
  %v793 = vunpack.c.h.b16 %v722
  %v794 = vunpack.c.l.b16 %v723
  %v795 = vunpack.c.h.b16 %v723
  %v796 = vunpack.c.l.b16 %v724
  %v797 = vunpack.c.h.b16 %v724
  %v798 = vunpack.c.l.b16 %v725
  %v799 = vunpack.c.h.b16 %v725
  %v800 = vunpack.c.l.b16 %v726
  %v801 = vunpack.c.h.b16 %v726
  %v802 = vunpack.c.l.b16 %v727
  %v803 = vunpack.c.h.b16 %v727
  %v804 = vunpack.c.l.b16 %v728
  %v805 = vunpack.c.h.b16 %v728
  %v806 = vunpack.c.l.b16 %v729
  %v807 = vunpack.c.h.b16 %v729
  %v808 = vunpack.c.l.b16 %v730
  %v809 = vunpack.c.h.b16 %v730
  %v810 = vunpack.c.l.b16 %v731
  %v811 = vunpack.c.h.b16 %v731
  %v812 = vunpack.c.l.b16 %v732
  %v813 = vunpack.c.h.b16 %v732
  %v814 = vunpack.c.l.b16 %v733
  %v815 = vunpack.c.h.b16 %v733
  %v816 = vunpack.c.l.b16 %v734
  %v817 = vunpack.c.h.b16 %v734
  %v818 = vunpack.c.l.b16 %v735
  %v819 = vunpack.c.h.b16 %v735
  %v820 = vunpack.c.l.b16 %v736
  %v821 = vunpack.c.h.b16 %v736
  %v822 = vunpack.c.l.b16 %v737
  %v823 = vunpack.c.h.b16 %v737
  %v824 = vunpack.c.l.b16 %v738
  %v825 = vunpack.c.h.b16 %v738
  %v826 = vunpack.c.l.b16 %v739
  %v827 = vunpack.c.h.b16 %v739
  %v828 = vunpack.c.l.b16 %v740
  %v829 = vunpack.c.h.b16 %v740
  %v830 = vunpack.c.l.b16 %v741
  %v831 = vunpack.c.h.b16 %v741
  %v832 = vunpack.c.l.b16 %v742
  %v833 = vunpack.c.h.b16 %v742
  %v834 = vunpack.c.l.b16 %v743
  %v835 = vunpack.c.h.b16 %v743
  %v836 = vunpack.c.l.b16 %v744
  %v837 = vunpack.c.h.b16 %v744
  %v838 = vunpack.c.l.b16 %v745
  %v839 = vunpack.c.h.b16 %v745
  %v840 = vunpack.c.l.b16 %v746
  %v841 = vunpack.c.h.b16 %v746
  %v842 = vunpack.c.l.b16 %v747
  %v843 = vunpack.c.h.b16 %v747
  %v844 = vpack.c.b16 %v780, %v780
  %v845 = vpack.c.b16 %v781, %v781
  %v846 = vpack.c.b16 %v782, %v782
  %v847 = vpack.c.b16 %v783, %v783
  %v848 = vpack.c.b16 %v784, %v784
  %v849 = vpack.c.b16 %v785, %v785
  %v850 = vpack.c.b16 %v786, %v786
  %v851 = vpack.c.b16 %v787, %v787
  %v852 = vpack.c.b16 %v788, %v788
  %v853 = vpack.c.b16 %v789, %v789
  %v854 = vpack.c.b16 %v790, %v790
  %v855 = vpack.c.b16 %v791, %v791
  %v856 = vpack.c.b16 %v792, %v792
  %v857 = vpack.c.b16 %v793, %v793
  %v858 = vpack.c.b16 %v794, %v794
  %v859 = vpack.c.b16 %v795, %v795
  %v860 = vpack.c.b16 %v796, %v796
  %v861 = vpack.c.b16 %v797, %v797
  %v862 = vpack.c.b16 %v798, %v798
  %v863 = vpack.c.b16 %v799, %v799
  %v864 = vpack.c.b16 %v800, %v800
  %v865 = vpack.c.b16 %v801, %v801
  %v866 = vpack.c.b16 %v802, %v802
  %v867 = vpack.c.b16 %v803, %v803
  %v868 = vpack.c.b16 %v804, %v804
  %v869 = vpack.c.b16 %v805, %v805
  %v870 = vpack.c.b16 %v806, %v806
  %v871 = vpack.c.b16 %v807, %v807
  %v872 = vpack.c.b16 %v808, %v808
  %v873 = vpack.c.b16 %v809, %v809
  %v874 = vpack.c.b16 %v810, %v810
  %v875 = vpack.c.b16 %v811, %v811
  %v876 = vpack.c.b16 %v812, %v812
  %v877 = vpack.c.b16 %v813, %v813
  %v878 = vpack.c.b16 %v814, %v814
  %v879 = vpack.c.b16 %v815, %v815
  %v880 = vpack.c.b16 %v816, %v816
  %v881 = vpack.c.b16 %v817, %v817
  %v882 = vpack.c.b16 %v818, %v818
  %v883 = vpack.c.b16 %v819, %v819
  %v884 = vpack.c.b16 %v820, %v820
  %v885 = vpack.c.b16 %v821, %v821
  %v886 = vpack.c.b16 %v822, %v822
  %v887 = vpack.c.b16 %v823, %v823
  %v888 = vpack.c.b16 %v824, %v824
  %v889 = vpack.c.b16 %v825, %v825
  %v890 = vpack.c.b16 %v826, %v826
  %v891 = vpack.c.b16 %v827, %v827
  %v892 = vpack.c.b16 %v828, %v828
  %v893 = vpack.c.b16 %v829, %v829
  %v894 = vpack.c.b16 %v830, %v830
  %v895 = vpack.c.b16 %v831, %v831
  %v896 = vpack.c.b16 %v832, %v832
  %v897 = vpack.c.b16 %v833, %v833
  %v898 = vpack.c.b16 %v834, %v834
  %v899 = vpack.c.b16 %v835, %v835
  %v900 = vpack.c.b16 %v836, %v836
  %v901 = vpack.c.b16 %v837, %v837
  %v902 = vpack.c.b16 %v838, %v838
  %v903 = vpack.c.b16 %v839, %v839
  %v904 = vpack.c.b16 %v840, %v840
  %v905 = vpack.c.b16 %v841, %v841
  %v906 = vpack.c.b16 %v842, %v842
  %v907 = vpack.c.b16 %v843, %v843
  %vm972 = vcmask 60416
  %973 = vst.msk [vmem:[%s7] sm:$0xf] %vm972, %v844
  %974 = vst.msk [vmem:[%s7 + $0x4] sm:$0xf] %vm972, %v845
  %975 = vst.msk [vmem:[%s7 + $0x8] sm:$0xf] %vm972, %v846
  %976 = vst.msk [vmem:[%s7 + $0xc] sm:$0xf] %vm972, %v847
  %977 = vst.msk [vmem:[%s7 + $0x10] sm:$0xf] %vm972, %v848
  %978 = vst.msk [vmem:[%s7 + $0x14] sm:$0xf] %vm972, %v849
  %979 = vst.msk [vmem:[%s7 + $0x18] sm:$0xf] %vm972, %v850
  %980 = vst.msk [vmem:[%s7 + $0x1c] sm:$0xf] %vm972, %v851
  %981 = vst.msk [vmem:[%s7 + $0x20] sm:$0xf] %vm972, %v852
  %982 = vst.msk [vmem:[%s7 + $0x24] sm:$0xf] %vm972, %v853
  %983 = vst.msk [vmem:[%s7 + $0x28] sm:$0xf] %vm972, %v854
  %984 = vst.msk [vmem:[%s7 + $0x2c] sm:$0xf] %vm972, %v855
  %985 = vst.msk [vmem:[%s7 + $0x30] sm:$0xf] %vm972, %v856
  %986 = vst.msk [vmem:[%s7 + $0x34] sm:$0xf] %vm972, %v857
  %987 = vst.msk [vmem:[%s7 + $0x38] sm:$0xf] %vm972, %v858
  %988 = vst.msk [vmem:[%s7 + $0x3c] sm:$0xf] %vm972, %v859
  %989 = vst.msk [vmem:[%s7 + $0x40] sm:$0xf] %vm972, %v860
  %990 = vst.msk [vmem:[%s7 + $0x44] sm:$0xf] %vm972, %v861
  %991 = vst.msk [vmem:[%s7 + $0x48] sm:$0xf] %vm972, %v862
  %992 = vst.msk [vmem:[%s7 + $0x4c] sm:$0xf] %vm972, %v863
  %993 = vst.msk [vmem:[%s7 + $0x50] sm:$0xf] %vm972, %v864
  %994 = vst.msk [vmem:[%s7 + $0x54] sm:$0xf] %vm972, %v865
  %995 = vst.msk [vmem:[%s7 + $0x58] sm:$0xf] %vm972, %v866
  %996 = vst.msk [vmem:[%s7 + $0x5c] sm:$0xf] %vm972, %v867
  %997 = vst.msk [vmem:[%s7 + $0x60] sm:$0xf] %vm972, %v868
  %998 = vst.msk [vmem:[%s7 + $0x64] sm:$0xf] %vm972, %v869
  %999 = vst.msk [vmem:[%s7 + $0x68] sm:$0xf] %vm972, %v870
  %1000 = vst.msk [vmem:[%s7 + $0x6c] sm:$0xf] %vm972, %v871
  %1001 = vst.msk [vmem:[%s7 + $0x70] sm:$0xf] %vm972, %v872
  %1002 = vst.msk [vmem:[%s7 + $0x74] sm:$0xf] %vm972, %v873
  %1003 = vst.msk [vmem:[%s7 + $0x78] sm:$0xf] %vm972, %v874
  %1004 = vst.msk [vmem:[%s7 + $0x7c] sm:$0xf] %vm972, %v875
  %1005 = vst.msk [vmem:[%s7 + $0x80] sm:$0xf] %vm972, %v876
  %1006 = vst.msk [vmem:[%s7 + $0x84] sm:$0xf] %vm972, %v877
  %1007 = vst.msk [vmem:[%s7 + $0x88] sm:$0xf] %vm972, %v878
  %1008 = vst.msk [vmem:[%s7 + $0x8c] sm:$0xf] %vm972, %v879
  %1009 = vst.msk [vmem:[%s7 + $0x90] sm:$0xf] %vm972, %v880
  %1010 = vst.msk [vmem:[%s7 + $0x94] sm:$0xf] %vm972, %v881
  %1011 = vst.msk [vmem:[%s7 + $0x98] sm:$0xf] %vm972, %v882
  %1012 = vst.msk [vmem:[%s7 + $0x9c] sm:$0xf] %vm972, %v883
  %1013 = vst.msk [vmem:[%s7 + $0xa0] sm:$0xf] %vm972, %v884
  %1014 = vst.msk [vmem:[%s7 + $0xa4] sm:$0xf] %vm972, %v885
  %1015 = vst.msk [vmem:[%s7 + $0xa8] sm:$0xf] %vm972, %v886
  %1016 = vst.msk [vmem:[%s7 + $0xac] sm:$0xf] %vm972, %v887
  %1017 = vst.msk [vmem:[%s7 + $0xb0] sm:$0xf] %vm972, %v888
  %1018 = vst.msk [vmem:[%s7 + $0xb4] sm:$0xf] %vm972, %v889
  %1019 = vst.msk [vmem:[%s7 + $0xb8] sm:$0xf] %vm972, %v890
  %1020 = vst.msk [vmem:[%s7 + $0xbc] sm:$0xf] %vm972, %v891
  %1021 = vst.msk [vmem:[%s7 + $0xc0] sm:$0xf] %vm972, %v892
  %1022 = vst.msk [vmem:[%s7 + $0xc4] sm:$0xf] %vm972, %v893
  %1023 = vst.msk [vmem:[%s7 + $0xc8] sm:$0xf] %vm972, %v894
  %1024 = vst.msk [vmem:[%s7 + $0xcc] sm:$0xf] %vm972, %v895
  %1025 = vst.msk [vmem:[%s7 + $0xd0] sm:$0xf] %vm972, %v896
  %1026 = vst.msk [vmem:[%s7 + $0xd4] sm:$0xf] %vm972, %v897
  %1027 = vst.msk [vmem:[%s7 + $0xd8] sm:$0xf] %vm972, %v898
  %1028 = vst.msk [vmem:[%s7 + $0xdc] sm:$0xf] %vm972, %v899
  %1029 = vst.msk [vmem:[%s7 + $0xe0] sm:$0xf] %vm972, %v900
  %1030 = vst.msk [vmem:[%s7 + $0xe4] sm:$0xf] %vm972, %v901
  %1031 = vst.msk [vmem:[%s7 + $0xe8] sm:$0xf] %vm972, %v902
  %1032 = vst.msk [vmem:[%s7 + $0xec] sm:$0xf] %vm972, %v903
  %1033 = vst.msk [vmem:[%s7 + $0xf0] sm:$0xf] %vm972, %v904
  %1034 = vst.msk [vmem:[%s7 + $0xf4] sm:$0xf] %vm972, %v905
  %1035 = vst.msk [vmem:[%s7 + $0xf8] sm:$0xf] %vm972, %v906
  %1036 = vst.msk [vmem:[%s7 + $0xfc] sm:$0xf] %vm972, %v907
  %v1037 = vld [vmem:[%s3] sm:$0x3]
  %v1038 = vld [vmem:[%s4] sm:$0x1]
  %v1040 = vlaneseq
  %v1041 = vshrl.u32 %v1040, 7
  %v1042 = vsub.s32 0, %v1041
  %v1043 = vrot.slane %v1038, %v1042
  %v1046 = vsel %vm359, %v1037, 0
  %1048 = vmatprep.subr.bf16.mxu0 0
  %1049 = vmatpush1.bf16.msra.mxu0 %v1046
  %1050 = vmatprep.subr.bf16.mxu0 0
  %1051 = vmatpush1.bf16.msra.mxu0 0
  %1052 = vmatprep.subr.bf16.mxu0 0
  %1053 = vmatpush1.bf16.msra.mxu0 0
  %1054 = vmatprep.subr.bf16.mxu0 0
  %1055 = vmatpush1.bf16.msra.mxu0 0
  %1056 = vmatprep.subr.bf16.mxu0 0
  %1057 = vmatpush1.bf16.msra.mxu0 0
  %1058 = vmatprep.subr.bf16.mxu0 0
  %1059 = vmatpush1.bf16.msra.mxu0 0
  %1060 = vmatprep.subr.bf16.mxu0 0
  %1061 = vmatpush1.bf16.msra.mxu0 0
  %1062 = vmatprep.subr.bf16.mxu0 0
  %1063 = vmatpush1.bf16.msra.mxu0 0
  %1064 = vmatprep.subr.bf16.mxu0 0
  %1065 = vmatpush1.bf16.msra.mxu0 0
  %1066 = vmatprep.subr.bf16.mxu0 0
  %1067 = vmatpush1.bf16.msra.mxu0 0
  %1068 = vmatprep.subr.bf16.mxu0 0
  %1069 = vmatpush1.bf16.msra.mxu0 0
  %1070 = vmatprep.subr.bf16.mxu0 0
  %1071 = vmatpush1.bf16.msra.mxu0 0
  %1072 = vmatprep.subr.bf16.mxu0 0
  %1073 = vmatpush1.bf16.msra.mxu0 0
  %1074 = vmatprep.subr.bf16.mxu0 0
  %1075 = vmatpush1.bf16.msra.mxu0 0
  %1076 = vmatprep.subr.bf16.mxu0 0
  %1077 = vmatpush1.bf16.msra.mxu0 0
  %1078 = vmatprep.subr.bf16.mxu0 0
  %1079 = vmatpush1.bf16.msra.mxu0 0
  %1080 = vmatprep.mubr.bf16.mxu0 0
  %1081 = vmatmul.mubr.bf16.gmra.mrb[0].mxu0 %v264
  %v1082 = vpop.f32.mrb[0].mxu0
  %v1083 = vadd.f32 %v1043, %v1082
  %v1084 = vpop.f32.mrb[0].mxu0
  %v1085 = vpop.f32.mrb[0].mxu0
  %v1086 = vadd.f32 %v1043, %v1085
  %v1087 = vpop.f32.mrb[0].mxu0
  %1088 = vmatprep.mubr.bf16.mxu0 0
  %1089 = vmatmul.mubr.bf16.gmra.mrb[0].mxu0 %v267
  %v1090 = vpop.f32.mrb[0].mxu0
  %v1091 = vadd.f32 %v1043, %v1090
  %v1092 = vpop.f32.mrb[0].mxu0
  %v1093 = vpop.f32.mrb[0].mxu0
  %v1094 = vadd.f32 %v1043, %v1093
  %v1095 = vpop.f32.mrb[0].mxu0
  %1096 = vmatprep.mubr.bf16.mxu0 0
  %1097 = vmatmul.mubr.bf16.gmra.mrb[0].mxu0 %v270
  %v1098 = vpop.f32.mrb[0].mxu0
  %v1099 = vadd.f32 %v1043, %v1098
  %v1100 = vpop.f32.mrb[0].mxu0
  %v1101 = vpop.f32.mrb[0].mxu0
  %v1102 = vadd.f32 %v1043, %v1101
  %v1103 = vpop.f32.mrb[0].mxu0
  %1104 = vmatprep.mubr.bf16.mxu0 0
  %1105 = vmatmul.mubr.bf16.gmra.mrb[0].mxu0 %v273
  %v1106 = vpop.f32.mrb[0].mxu0
  %v1107 = vadd.f32 %v1043, %v1106
  %v1108 = vpop.f32.mrb[0].mxu0
  %v1109 = vpop.f32.mrb[0].mxu0
  %v1110 = vadd.f32 %v1043, %v1109
  %v1111 = vpop.f32.mrb[0].mxu0
  %1112 = vmatprep.mubr.bf16.mxu0 0
  %1113 = vmatmul.mubr.bf16.gmra.mrb[0].mxu0 %v276
  %v1114 = vpop.f32.mrb[0].mxu0
  %v1115 = vadd.f32 %v1043, %v1114
  %v1116 = vpop.f32.mrb[0].mxu0
  %v1117 = vpop.f32.mrb[0].mxu0
  %v1118 = vadd.f32 %v1043, %v1117
  %v1119 = vpop.f32.mrb[0].mxu0
  %1120 = vmatprep.mubr.bf16.mxu0 0
  %1121 = vmatmul.mubr.bf16.gmra.mrb[0].mxu0 %v279
  %v1122 = vpop.f32.mrb[0].mxu0
  %v1123 = vadd.f32 %v1043, %v1122
  %v1124 = vpop.f32.mrb[0].mxu0
  %v1125 = vpop.f32.mrb[0].mxu0
  %v1126 = vadd.f32 %v1043, %v1125
  %v1127 = vpop.f32.mrb[0].mxu0
  %1128 = vmatprep.mubr.bf16.mxu0 0
  %1129 = vmatmul.mubr.bf16.gmra.mrb[0].mxu0 %v282
  %v1130 = vpop.f32.mrb[0].mxu0
  %v1131 = vadd.f32 %v1043, %v1130
  %v1132 = vpop.f32.mrb[0].mxu0
  %v1133 = vpop.f32.mrb[0].mxu0
  %v1134 = vadd.f32 %v1043, %v1133
  %v1135 = vpop.f32.mrb[0].mxu0
  %1136 = vmatprep.mubr.bf16.mxu0 0
  %1137 = vmatmul.mubr.bf16.gmra.mrb[0].mxu0 %v285
  %v1138 = vpop.f32.mrb[0].mxu0
  %v1139 = vadd.f32 %v1043, %v1138
  %v1140 = vpop.f32.mrb[0].mxu0
  %v1141 = vpop.f32.mrb[0].mxu0
  %v1142 = vadd.f32 %v1043, %v1141
  %v1143 = vpop.f32.mrb[0].mxu0
  %1144 = vmatprep.mubr.bf16.mxu0 0
  %1145 = vmatmul.mubr.bf16.gmra.mrb[0].mxu0 %v288
  %v1146 = vpop.f32.mrb[0].mxu0
  %v1147 = vadd.f32 %v1043, %v1146
  %v1148 = vpop.f32.mrb[0].mxu0
  %v1149 = vpop.f32.mrb[0].mxu0
  %v1150 = vadd.f32 %v1043, %v1149
  %v1151 = vpop.f32.mrb[0].mxu0
  %1152 = vmatprep.mubr.bf16.mxu0 0
  %1153 = vmatmul.mubr.bf16.gmra.mrb[0].mxu0 %v291
  %v1154 = vpop.f32.mrb[0].mxu0
  %v1155 = vadd.f32 %v1043, %v1154
  %v1156 = vpop.f32.mrb[0].mxu0
  %v1157 = vpop.f32.mrb[0].mxu0
  %v1158 = vadd.f32 %v1043, %v1157
  %v1159 = vpop.f32.mrb[0].mxu0
  %1160 = vmatprep.mubr.bf16.mxu0 0
  %1161 = vmatmul.mubr.bf16.gmra.mrb[0].mxu0 %v294
  %v1162 = vpop.f32.mrb[0].mxu0
  %v1163 = vadd.f32 %v1043, %v1162
  %v1164 = vpop.f32.mrb[0].mxu0
  %v1165 = vpop.f32.mrb[0].mxu0
  %v1166 = vadd.f32 %v1043, %v1165
  %v1167 = vpop.f32.mrb[0].mxu0
  %1168 = vmatprep.mubr.bf16.mxu0 0
  %1169 = vmatmul.mubr.bf16.gmra.mrb[0].mxu0 %v297
  %v1170 = vpop.f32.mrb[0].mxu0
  %v1171 = vadd.f32 %v1043, %v1170
  %v1172 = vpop.f32.mrb[0].mxu0
  %v1173 = vpop.f32.mrb[0].mxu0
  %v1174 = vadd.f32 %v1043, %v1173
  %v1175 = vpop.f32.mrb[0].mxu0
  %1176 = vmatprep.mubr.bf16.mxu0 0
  %1177 = vmatmul.mubr.bf16.gmra.mrb[0].mxu0 %v300
  %v1178 = vpop.f32.mrb[0].mxu0
  %v1179 = vadd.f32 %v1043, %v1178
  %v1180 = vpop.f32.mrb[0].mxu0
  %v1181 = vpop.f32.mrb[0].mxu0
  %v1182 = vadd.f32 %v1043, %v1181
  %v1183 = vpop.f32.mrb[0].mxu0
  %1184 = vmatprep.mubr.bf16.mxu0 0
  %1185 = vmatmul.mubr.bf16.gmra.mrb[0].mxu0 %v303
  %v1186 = vpop.f32.mrb[0].mxu0
  %v1187 = vadd.f32 %v1043, %v1186
  %v1188 = vpop.f32.mrb[0].mxu0
  %v1189 = vpop.f32.mrb[0].mxu0
  %v1190 = vadd.f32 %v1043, %v1189
  %v1191 = vpop.f32.mrb[0].mxu0
  %1192 = vmatprep.mubr.bf16.mxu0 0
  %1193 = vmatmul.mubr.bf16.gmra.mrb[0].mxu0 %v306
  %v1194 = vpop.f32.mrb[0].mxu0
  %v1195 = vadd.f32 %v1043, %v1194
  %v1196 = vpop.f32.mrb[0].mxu0
  %v1197 = vpop.f32.mrb[0].mxu0
  %v1198 = vadd.f32 %v1043, %v1197
  %v1199 = vpop.f32.mrb[0].mxu0
  %1200 = vmatprep.mubr.bf16.mxu0 0
  %1201 = vmatmul.mubr.bf16.gmra.mrb[0].mxu0 %v309
  %v1202 = vpop.f32.mrb[0].mxu0
  %v1203 = vadd.f32 %v1043, %v1202
  %v1204 = vpop.f32.mrb[0].mxu0
  %v1205 = vpop.f32.mrb[0].mxu0
  %v1206 = vadd.f32 %v1043, %v1205
  %v1207 = vpop.f32.mrb[0].mxu0
  %1208 = vmatprep.mubr.bf16.mxu0 0
  %1209 = vmatmul.mubr.bf16.gmra.mrb[0].mxu0 %v312
  %v1210 = vpop.f32.mrb[0].mxu0
  %v1211 = vadd.f32 %v1043, %v1210
  %v1212 = vpop.f32.mrb[0].mxu0
  %v1213 = vpop.f32.mrb[0].mxu0
  %v1214 = vadd.f32 %v1043, %v1213
  %v1215 = vpop.f32.mrb[0].mxu0
  %1216 = vmatprep.mubr.bf16.mxu0 0
  %1217 = vmatmul.mubr.bf16.gmra.mrb[0].mxu0 %v315
  %v1218 = vpop.f32.mrb[0].mxu0
  %v1219 = vadd.f32 %v1043, %v1218
  %v1220 = vpop.f32.mrb[0].mxu0
  %v1221 = vpop.f32.mrb[0].mxu0
  %v1222 = vadd.f32 %v1043, %v1221
  %v1223 = vpop.f32.mrb[0].mxu0
  %1224 = vmatprep.mubr.bf16.mxu0 0
  %1225 = vmatmul.mubr.bf16.gmra.mrb[0].mxu0 %v318
  %v1226 = vpop.f32.mrb[0].mxu0
  %v1227 = vadd.f32 %v1043, %v1226
  %v1228 = vpop.f32.mrb[0].mxu0
  %v1229 = vpop.f32.mrb[0].mxu0
  %v1230 = vadd.f32 %v1043, %v1229
  %v1231 = vpop.f32.mrb[0].mxu0
  %1232 = vmatprep.mubr.bf16.mxu0 0
  %1233 = vmatmul.mubr.bf16.gmra.mrb[0].mxu0 %v321
  %v1234 = vpop.f32.mrb[0].mxu0
  %v1235 = vadd.f32 %v1043, %v1234
  %v1236 = vpop.f32.mrb[0].mxu0
  %v1237 = vpop.f32.mrb[0].mxu0
  %v1238 = vadd.f32 %v1043, %v1237
  %v1239 = vpop.f32.mrb[0].mxu0
  %1240 = vmatprep.mubr.bf16.mxu0 0
  %1241 = vmatmul.mubr.bf16.gmra.mrb[0].mxu0 %v324
  %v1242 = vpop.f32.mrb[0].mxu0
  %v1243 = vadd.f32 %v1043, %v1242
  %v1244 = vpop.f32.mrb[0].mxu0
  %v1245 = vpop.f32.mrb[0].mxu0
  %v1246 = vadd.f32 %v1043, %v1245
  %v1247 = vpop.f32.mrb[0].mxu0
  %1248 = vmatprep.mubr.bf16.mxu0 0
  %1249 = vmatmul.mubr.bf16.gmra.mrb[0].mxu0 %v327
  %v1250 = vpop.f32.mrb[0].mxu0
  %v1251 = vadd.f32 %v1043, %v1250
  %v1252 = vpop.f32.mrb[0].mxu0
  %v1253 = vpop.f32.mrb[0].mxu0
  %v1254 = vadd.f32 %v1043, %v1253
  %v1255 = vpop.f32.mrb[0].mxu0
  %1256 = vmatprep.mubr.bf16.mxu0 0
  %1257 = vmatmul.mubr.bf16.gmra.mrb[0].mxu0 %v330
  %v1258 = vpop.f32.mrb[0].mxu0
  %v1259 = vadd.f32 %v1043, %v1258
  %v1260 = vpop.f32.mrb[0].mxu0
  %v1261 = vpop.f32.mrb[0].mxu0
  %v1262 = vadd.f32 %v1043, %v1261
  %v1263 = vpop.f32.mrb[0].mxu0
  %1264 = vmatprep.mubr.bf16.mxu0 0
  %1265 = vmatmul.mubr.bf16.gmra.mrb[0].mxu0 %v333
  %v1266 = vpop.f32.mrb[0].mxu0
  %v1267 = vadd.f32 %v1043, %v1266
  %v1268 = vpop.f32.mrb[0].mxu0
  %v1269 = vpop.f32.mrb[0].mxu0
  %v1270 = vadd.f32 %v1043, %v1269
  %v1271 = vpop.f32.mrb[0].mxu0
  %1272 = vmatprep.mubr.bf16.mxu0 0
  %1273 = vmatmul.mubr.bf16.gmra.mrb[0].mxu0 %v336
  %v1274 = vpop.f32.mrb[0].mxu0
  %v1275 = vadd.f32 %v1043, %v1274
  %v1276 = vpop.f32.mrb[0].mxu0
  %v1277 = vpop.f32.mrb[0].mxu0
  %v1278 = vadd.f32 %v1043, %v1277
  %v1279 = vpop.f32.mrb[0].mxu0
  %1280 = vmatprep.mubr.bf16.mxu0 0
  %1281 = vmatmul.mubr.bf16.gmra.mrb[0].mxu0 %v339
  %v1282 = vpop.f32.mrb[0].mxu0
  %v1283 = vadd.f32 %v1043, %v1282
  %v1284 = vpop.f32.mrb[0].mxu0
  %v1285 = vpop.f32.mrb[0].mxu0
  %v1286 = vadd.f32 %v1043, %v1285
  %v1287 = vpop.f32.mrb[0].mxu0
  %1288 = vmatprep.mubr.bf16.mxu0 0
  %1289 = vmatmul.mubr.bf16.gmra.mrb[0].mxu0 %v342
  %v1290 = vpop.f32.mrb[0].mxu0
  %v1291 = vadd.f32 %v1043, %v1290
  %v1292 = vpop.f32.mrb[0].mxu0
  %v1293 = vpop.f32.mrb[0].mxu0
  %v1294 = vadd.f32 %v1043, %v1293
  %v1295 = vpop.f32.mrb[0].mxu0
  %1296 = vmatprep.mubr.bf16.mxu0 0
  %1297 = vmatmul.mubr.bf16.gmra.mrb[0].mxu0 %v345
  %v1298 = vpop.f32.mrb[0].mxu0
  %v1299 = vadd.f32 %v1043, %v1298
  %v1300 = vpop.f32.mrb[0].mxu0
  %v1301 = vpop.f32.mrb[0].mxu0
  %v1302 = vadd.f32 %v1043, %v1301
  %v1303 = vpop.f32.mrb[0].mxu0
  %1304 = vmatprep.mubr.bf16.mxu0 0
  %1305 = vmatmul.mubr.bf16.gmra.mrb[0].mxu0 %v348
  %v1306 = vpop.f32.mrb[0].mxu0
  %v1307 = vadd.f32 %v1043, %v1306
  %v1308 = vpop.f32.mrb[0].mxu0
  %v1309 = vpop.f32.mrb[0].mxu0
  %v1310 = vadd.f32 %v1043, %v1309
  %v1311 = vpop.f32.mrb[0].mxu0
  %1312 = vmatprep.mubr.bf16.mxu0 0
  %1313 = vmatmul.mubr.bf16.gmra.mrb[0].mxu0 %v351
  %v1314 = vpop.f32.mrb[0].mxu0
  %v1315 = vadd.f32 %v1043, %v1314
  %v1316 = vpop.f32.mrb[0].mxu0
  %v1317 = vpop.f32.mrb[0].mxu0
  %v1318 = vadd.f32 %v1043, %v1317
  %v1319 = vpop.f32.mrb[0].mxu0
  %1320 = vmatprep.mubr.bf16.mxu0 0
  %1321 = vmatmul.mubr.bf16.gmra.mrb[0].mxu0 %v354
  %v1322 = vpop.f32.mrb[0].mxu0
  %v1323 = vadd.f32 %v1043, %v1322
  %v1324 = vpop.f32.mrb[0].mxu0
  %v1325 = vpop.f32.mrb[0].mxu0
  %v1326 = vadd.f32 %v1043, %v1325
  %v1327 = vpop.f32.mrb[0].mxu0
  %1328 = vmatprep.mubr.bf16.mxu0 0
  %1329 = vmatmul.mubr.bf16.gmra.mrb[0].mxu0 %v357
  %v1330 = vpop.f32.mrb[0].mxu0
  %v1331 = vadd.f32 %v1043, %v1330
  %v1332 = vpop.f32.mrb[0].mxu0
  %v1333 = vpop.f32.mrb[0].mxu0
  %v1334 = vadd.f32 %v1043, %v1333
  %v1335 = vpop.f32.mrb[0].mxu0
  %1336 = vdwg.mxu0
  %v1337 = vmax.f32 %v1083, 0.0
  %v1338 = vmax.f32 %v1086, 0.0
  %v1339 = vmax.f32 %v1091, 0.0
  %v1340 = vmax.f32 %v1094, 0.0
  %v1341 = vmax.f32 %v1099, 0.0
  %v1342 = vmax.f32 %v1102, 0.0
  %v1343 = vmax.f32 %v1107, 0.0
  %v1344 = vmax.f32 %v1110, 0.0
  %v1345 = vmax.f32 %v1115, 0.0
  %v1346 = vmax.f32 %v1118, 0.0
  %v1347 = vmax.f32 %v1123, 0.0
  %v1348 = vmax.f32 %v1126, 0.0
  %v1349 = vmax.f32 %v1131, 0.0
  %v1350 = vmax.f32 %v1134, 0.0
  %v1351 = vmax.f32 %v1139, 0.0
  %v1352 = vmax.f32 %v1142, 0.0
  %v1353 = vmax.f32 %v1147, 0.0
  %v1354 = vmax.f32 %v1150, 0.0
  %v1355 = vmax.f32 %v1155, 0.0
  %v1356 = vmax.f32 %v1158, 0.0
  %v1357 = vmax.f32 %v1163, 0.0
  %v1358 = vmax.f32 %v1166, 0.0
  %v1359 = vmax.f32 %v1171, 0.0
  %v1360 = vmax.f32 %v1174, 0.0
  %v1361 = vmax.f32 %v1179, 0.0
  %v1362 = vmax.f32 %v1182, 0.0
  %v1363 = vmax.f32 %v1187, 0.0
  %v1364 = vmax.f32 %v1190, 0.0
  %v1365 = vmax.f32 %v1195, 0.0
  %v1366 = vmax.f32 %v1198, 0.0
  %v1367 = vmax.f32 %v1203, 0.0
  %v1368 = vmax.f32 %v1206, 0.0
  %v1369 = vmax.f32 %v1211, 0.0
  %v1370 = vmax.f32 %v1214, 0.0
  %v1371 = vmax.f32 %v1219, 0.0
  %v1372 = vmax.f32 %v1222, 0.0
  %v1373 = vmax.f32 %v1227, 0.0
  %v1374 = vmax.f32 %v1230, 0.0
  %v1375 = vmax.f32 %v1235, 0.0
  %v1376 = vmax.f32 %v1238, 0.0
  %v1377 = vmax.f32 %v1243, 0.0
  %v1378 = vmax.f32 %v1246, 0.0
  %v1379 = vmax.f32 %v1251, 0.0
  %v1380 = vmax.f32 %v1254, 0.0
  %v1381 = vmax.f32 %v1259, 0.0
  %v1382 = vmax.f32 %v1262, 0.0
  %v1383 = vmax.f32 %v1267, 0.0
  %v1384 = vmax.f32 %v1270, 0.0
  %v1385 = vmax.f32 %v1275, 0.0
  %v1386 = vmax.f32 %v1278, 0.0
  %v1387 = vmax.f32 %v1283, 0.0
  %v1388 = vmax.f32 %v1286, 0.0
  %v1389 = vmax.f32 %v1291, 0.0
  %v1390 = vmax.f32 %v1294, 0.0
  %v1391 = vmax.f32 %v1299, 0.0
  %v1392 = vmax.f32 %v1302, 0.0
  %v1393 = vmax.f32 %v1307, 0.0
  %v1394 = vmax.f32 %v1310, 0.0
  %v1395 = vmax.f32 %v1315, 0.0
  %v1396 = vmax.f32 %v1318, 0.0
  %v1397 = vmax.f32 %v1323, 0.0
  %v1398 = vmax.f32 %v1326, 0.0
  %v1399 = vmax.f32 %v1331, 0.0
  %v1400 = vmax.f32 %v1334, 0.0
  %v1401 = vpack.c.bf16 %v1338, %v1337
  %v1402 = vpack.c.bf16 %v1340, %v1339
  %v1403 = vpack.c.bf16 %v1342, %v1341
  %v1404 = vpack.c.bf16 %v1344, %v1343
  %v1405 = vpack.c.bf16 %v1346, %v1345
  %v1406 = vpack.c.bf16 %v1348, %v1347
  %v1407 = vpack.c.bf16 %v1350, %v1349
  %v1408 = vpack.c.bf16 %v1352, %v1351
  %v1409 = vpack.c.bf16 %v1354, %v1353
  %v1410 = vpack.c.bf16 %v1356, %v1355
  %v1411 = vpack.c.bf16 %v1358, %v1357
  %v1412 = vpack.c.bf16 %v1360, %v1359
  %v1413 = vpack.c.bf16 %v1362, %v1361
  %v1414 = vpack.c.bf16 %v1364, %v1363
  %v1415 = vpack.c.bf16 %v1366, %v1365
  %v1416 = vpack.c.bf16 %v1368, %v1367
  %v1417 = vpack.c.bf16 %v1370, %v1369
  %v1418 = vpack.c.bf16 %v1372, %v1371
  %v1419 = vpack.c.bf16 %v1374, %v1373
  %v1420 = vpack.c.bf16 %v1376, %v1375
  %v1421 = vpack.c.bf16 %v1378, %v1377
  %v1422 = vpack.c.bf16 %v1380, %v1379
  %v1423 = vpack.c.bf16 %v1382, %v1381
  %v1424 = vpack.c.bf16 %v1384, %v1383
  %v1425 = vpack.c.bf16 %v1386, %v1385
  %v1426 = vpack.c.bf16 %v1388, %v1387
  %v1427 = vpack.c.bf16 %v1390, %v1389
  %v1428 = vpack.c.bf16 %v1392, %v1391
  %v1429 = vpack.c.bf16 %v1394, %v1393
  %v1430 = vpack.c.bf16 %v1396, %v1395
  %v1431 = vpack.c.bf16 %v1398, %v1397
  %v1432 = vpack.c.bf16 %v1400, %v1399
  %v1465 = vunpack.c.l.b16 %v1401
  %v1466 = vunpack.c.h.b16 %v1401
  %v1467 = vunpack.c.l.b16 %v1402
  %v1468 = vunpack.c.h.b16 %v1402
  %v1469 = vunpack.c.l.b16 %v1403
  %v1470 = vunpack.c.h.b16 %v1403
  %v1471 = vunpack.c.l.b16 %v1404
  %v1472 = vunpack.c.h.b16 %v1404
  %v1473 = vunpack.c.l.b16 %v1405
  %v1474 = vunpack.c.h.b16 %v1405
  %v1475 = vunpack.c.l.b16 %v1406
  %v1476 = vunpack.c.h.b16 %v1406
  %v1477 = vunpack.c.l.b16 %v1407
  %v1478 = vunpack.c.h.b16 %v1407
  %v1479 = vunpack.c.l.b16 %v1408
  %v1480 = vunpack.c.h.b16 %v1408
  %v1481 = vunpack.c.l.b16 %v1409
  %v1482 = vunpack.c.h.b16 %v1409
  %v1483 = vunpack.c.l.b16 %v1410
  %v1484 = vunpack.c.h.b16 %v1410
  %v1485 = vunpack.c.l.b16 %v1411
  %v1486 = vunpack.c.h.b16 %v1411
  %v1487 = vunpack.c.l.b16 %v1412
  %v1488 = vunpack.c.h.b16 %v1412
  %v1489 = vunpack.c.l.b16 %v1413
  %v1490 = vunpack.c.h.b16 %v1413
  %v1491 = vunpack.c.l.b16 %v1414
  %v1492 = vunpack.c.h.b16 %v1414
  %v1493 = vunpack.c.l.b16 %v1415
  %v1494 = vunpack.c.h.b16 %v1415
  %v1495 = vunpack.c.l.b16 %v1416
  %v1496 = vunpack.c.h.b16 %v1416
  %v1497 = vunpack.c.l.b16 %v1417
  %v1498 = vunpack.c.h.b16 %v1417
  %v1499 = vunpack.c.l.b16 %v1418
  %v1500 = vunpack.c.h.b16 %v1418
  %v1501 = vunpack.c.l.b16 %v1419
  %v1502 = vunpack.c.h.b16 %v1419
  %v1503 = vunpack.c.l.b16 %v1420
  %v1504 = vunpack.c.h.b16 %v1420
  %v1505 = vunpack.c.l.b16 %v1421
  %v1506 = vunpack.c.h.b16 %v1421
  %v1507 = vunpack.c.l.b16 %v1422
  %v1508 = vunpack.c.h.b16 %v1422
  %v1509 = vunpack.c.l.b16 %v1423
  %v1510 = vunpack.c.h.b16 %v1423
  %v1511 = vunpack.c.l.b16 %v1424
  %v1512 = vunpack.c.h.b16 %v1424
  %v1513 = vunpack.c.l.b16 %v1425
  %v1514 = vunpack.c.h.b16 %v1425
  %v1515 = vunpack.c.l.b16 %v1426
  %v1516 = vunpack.c.h.b16 %v1426
  %v1517 = vunpack.c.l.b16 %v1427
  %v1518 = vunpack.c.h.b16 %v1427
  %v1519 = vunpack.c.l.b16 %v1428
  %v1520 = vunpack.c.h.b16 %v1428
  %v1521 = vunpack.c.l.b16 %v1429
  %v1522 = vunpack.c.h.b16 %v1429
  %v1523 = vunpack.c.l.b16 %v1430
  %v1524 = vunpack.c.h.b16 %v1430
  %v1525 = vunpack.c.l.b16 %v1431
  %v1526 = vunpack.c.h.b16 %v1431
  %v1527 = vunpack.c.l.b16 %v1432
  %v1528 = vunpack.c.h.b16 %v1432
  %v1529 = vpack.c.b16 %v1465, %v1465
  %v1530 = vpack.c.b16 %v1466, %v1466
  %v1531 = vpack.c.b16 %v1467, %v1467
  %v1532 = vpack.c.b16 %v1468, %v1468
  %v1533 = vpack.c.b16 %v1469, %v1469
  %v1534 = vpack.c.b16 %v1470, %v1470
  %v1535 = vpack.c.b16 %v1471, %v1471
  %v1536 = vpack.c.b16 %v1472, %v1472
  %v1537 = vpack.c.b16 %v1473, %v1473
  %v1538 = vpack.c.b16 %v1474, %v1474
  %v1539 = vpack.c.b16 %v1475, %v1475
  %v1540 = vpack.c.b16 %v1476, %v1476
  %v1541 = vpack.c.b16 %v1477, %v1477
  %v1542 = vpack.c.b16 %v1478, %v1478
  %v1543 = vpack.c.b16 %v1479, %v1479
  %v1544 = vpack.c.b16 %v1480, %v1480
  %v1545 = vpack.c.b16 %v1481, %v1481
  %v1546 = vpack.c.b16 %v1482, %v1482
  %v1547 = vpack.c.b16 %v1483, %v1483
  %v1548 = vpack.c.b16 %v1484, %v1484
  %v1549 = vpack.c.b16 %v1485, %v1485
  %v1550 = vpack.c.b16 %v1486, %v1486
  %v1551 = vpack.c.b16 %v1487, %v1487
  %v1552 = vpack.c.b16 %v1488, %v1488
  %v1553 = vpack.c.b16 %v1489, %v1489
  %v1554 = vpack.c.b16 %v1490, %v1490
  %v1555 = vpack.c.b16 %v1491, %v1491
  %v1556 = vpack.c.b16 %v1492, %v1492
  %v1557 = vpack.c.b16 %v1493, %v1493
  %v1558 = vpack.c.b16 %v1494, %v1494
  %v1559 = vpack.c.b16 %v1495, %v1495
  %v1560 = vpack.c.b16 %v1496, %v1496
  %v1561 = vpack.c.b16 %v1497, %v1497
  %v1562 = vpack.c.b16 %v1498, %v1498
  %v1563 = vpack.c.b16 %v1499, %v1499
  %v1564 = vpack.c.b16 %v1500, %v1500
  %v1565 = vpack.c.b16 %v1501, %v1501
  %v1566 = vpack.c.b16 %v1502, %v1502
  %v1567 = vpack.c.b16 %v1503, %v1503
  %v1568 = vpack.c.b16 %v1504, %v1504
  %v1569 = vpack.c.b16 %v1505, %v1505
  %v1570 = vpack.c.b16 %v1506, %v1506
  %v1571 = vpack.c.b16 %v1507, %v1507
  %v1572 = vpack.c.b16 %v1508, %v1508
  %v1573 = vpack.c.b16 %v1509, %v1509
  %v1574 = vpack.c.b16 %v1510, %v1510
  %v1575 = vpack.c.b16 %v1511, %v1511
  %v1576 = vpack.c.b16 %v1512, %v1512
  %v1577 = vpack.c.b16 %v1513, %v1513
  %v1578 = vpack.c.b16 %v1514, %v1514
  %v1579 = vpack.c.b16 %v1515, %v1515
  %v1580 = vpack.c.b16 %v1516, %v1516
  %v1581 = vpack.c.b16 %v1517, %v1517
  %v1582 = vpack.c.b16 %v1518, %v1518
  %v1583 = vpack.c.b16 %v1519, %v1519
  %v1584 = vpack.c.b16 %v1520, %v1520
  %v1585 = vpack.c.b16 %v1521, %v1521
  %v1586 = vpack.c.b16 %v1522, %v1522
  %v1587 = vpack.c.b16 %v1523, %v1523
  %v1588 = vpack.c.b16 %v1524, %v1524
  %v1589 = vpack.c.b16 %v1525, %v1525
  %v1590 = vpack.c.b16 %v1526, %v1526
  %v1591 = vpack.c.b16 %v1527, %v1527
  %v1592 = vpack.c.b16 %v1528, %v1528
  %1657 = vst.msk [vmem:[%s8] sm:$0xf] %vm972, %v1529
  %1658 = vst.msk [vmem:[%s8 + $0x4] sm:$0xf] %vm972, %v1530
  %1659 = vst.msk [vmem:[%s8 + $0x8] sm:$0xf] %vm972, %v1531
  %1660 = vst.msk [vmem:[%s8 + $0xc] sm:$0xf] %vm972, %v1532
  %1661 = vst.msk [vmem:[%s8 + $0x10] sm:$0xf] %vm972, %v1533
  %1662 = vst.msk [vmem:[%s8 + $0x14] sm:$0xf] %vm972, %v1534
  %1663 = vst.msk [vmem:[%s8 + $0x18] sm:$0xf] %vm972, %v1535
  %1664 = vst.msk [vmem:[%s8 + $0x1c] sm:$0xf] %vm972, %v1536
  %1665 = vst.msk [vmem:[%s8 + $0x20] sm:$0xf] %vm972, %v1537
  %1666 = vst.msk [vmem:[%s8 + $0x24] sm:$0xf] %vm972, %v1538
  %1667 = vst.msk [vmem:[%s8 + $0x28] sm:$0xf] %vm972, %v1539
  %1668 = vst.msk [vmem:[%s8 + $0x2c] sm:$0xf] %vm972, %v1540
  %1669 = vst.msk [vmem:[%s8 + $0x30] sm:$0xf] %vm972, %v1541
  %1670 = vst.msk [vmem:[%s8 + $0x34] sm:$0xf] %vm972, %v1542
  %1671 = vst.msk [vmem:[%s8 + $0x38] sm:$0xf] %vm972, %v1543
  %1672 = vst.msk [vmem:[%s8 + $0x3c] sm:$0xf] %vm972, %v1544
  %1673 = vst.msk [vmem:[%s8 + $0x40] sm:$0xf] %vm972, %v1545
  %1674 = vst.msk [vmem:[%s8 + $0x44] sm:$0xf] %vm972, %v1546
  %1675 = vst.msk [vmem:[%s8 + $0x48] sm:$0xf] %vm972, %v1547
  %1676 = vst.msk [vmem:[%s8 + $0x4c] sm:$0xf] %vm972, %v1548
  %1677 = vst.msk [vmem:[%s8 + $0x50] sm:$0xf] %vm972, %v1549
  %1678 = vst.msk [vmem:[%s8 + $0x54] sm:$0xf] %vm972, %v1550
  %1679 = vst.msk [vmem:[%s8 + $0x58] sm:$0xf] %vm972, %v1551
  %1680 = vst.msk [vmem:[%s8 + $0x5c] sm:$0xf] %vm972, %v1552
  %1681 = vst.msk [vmem:[%s8 + $0x60] sm:$0xf] %vm972, %v1553
  %1682 = vst.msk [vmem:[%s8 + $0x64] sm:$0xf] %vm972, %v1554
  %1683 = vst.msk [vmem:[%s8 + $0x68] sm:$0xf] %vm972, %v1555
  %1684 = vst.msk [vmem:[%s8 + $0x6c] sm:$0xf] %vm972, %v1556
  %1685 = vst.msk [vmem:[%s8 + $0x70] sm:$0xf] %vm972, %v1557
  %1686 = vst.msk [vmem:[%s8 + $0x74] sm:$0xf] %vm972, %v1558
  %1687 = vst.msk [vmem:[%s8 + $0x78] sm:$0xf] %vm972, %v1559
  %1688 = vst.msk [vmem:[%s8 + $0x7c] sm:$0xf] %vm972, %v1560
  %1689 = vst.msk [vmem:[%s8 + $0x80] sm:$0xf] %vm972, %v1561
  %1690 = vst.msk [vmem:[%s8 + $0x84] sm:$0xf] %vm972, %v1562
  %1691 = vst.msk [vmem:[%s8 + $0x88] sm:$0xf] %vm972, %v1563
  %1692 = vst.msk [vmem:[%s8 + $0x8c] sm:$0xf] %vm972, %v1564
  %1693 = vst.msk [vmem:[%s8 + $0x90] sm:$0xf] %vm972, %v1565
  %1694 = vst.msk [vmem:[%s8 + $0x94] sm:$0xf] %vm972, %v1566
  %1695 = vst.msk [vmem:[%s8 + $0x98] sm:$0xf] %vm972, %v1567
  %1696 = vst.msk [vmem:[%s8 + $0x9c] sm:$0xf] %vm972, %v1568
  %1697 = vst.msk [vmem:[%s8 + $0xa0] sm:$0xf] %vm972, %v1569
  %1698 = vst.msk [vmem:[%s8 + $0xa4] sm:$0xf] %vm972, %v1570
  %1699 = vst.msk [vmem:[%s8 + $0xa8] sm:$0xf] %vm972, %v1571
  %1700 = vst.msk [vmem:[%s8 + $0xac] sm:$0xf] %vm972, %v1572
  %1701 = vst.msk [vmem:[%s8 + $0xb0] sm:$0xf] %vm972, %v1573
  %1702 = vst.msk [vmem:[%s8 + $0xb4] sm:$0xf] %vm972, %v1574
  %1703 = vst.msk [vmem:[%s8 + $0xb8] sm:$0xf] %vm972, %v1575
  %1704 = vst.msk [vmem:[%s8 + $0xbc] sm:$0xf] %vm972, %v1576
  %1705 = vst.msk [vmem:[%s8 + $0xc0] sm:$0xf] %vm972, %v1577
  %1706 = vst.msk [vmem:[%s8 + $0xc4] sm:$0xf] %vm972, %v1578
  %1707 = vst.msk [vmem:[%s8 + $0xc8] sm:$0xf] %vm972, %v1579
  %1708 = vst.msk [vmem:[%s8 + $0xcc] sm:$0xf] %vm972, %v1580
  %1709 = vst.msk [vmem:[%s8 + $0xd0] sm:$0xf] %vm972, %v1581
  %1710 = vst.msk [vmem:[%s8 + $0xd4] sm:$0xf] %vm972, %v1582
  %1711 = vst.msk [vmem:[%s8 + $0xd8] sm:$0xf] %vm972, %v1583
  %1712 = vst.msk [vmem:[%s8 + $0xdc] sm:$0xf] %vm972, %v1584
  %1713 = vst.msk [vmem:[%s8 + $0xe0] sm:$0xf] %vm972, %v1585
  %1714 = vst.msk [vmem:[%s8 + $0xe4] sm:$0xf] %vm972, %v1586
  %1715 = vst.msk [vmem:[%s8 + $0xe8] sm:$0xf] %vm972, %v1587
  %1716 = vst.msk [vmem:[%s8 + $0xec] sm:$0xf] %vm972, %v1588
  %1717 = vst.msk [vmem:[%s8 + $0xf0] sm:$0xf] %vm972, %v1589
  %1718 = vst.msk [vmem:[%s8 + $0xf4] sm:$0xf] %vm972, %v1590
  %1719 = vst.msk [vmem:[%s8 + $0xf8] sm:$0xf] %vm972, %v1591
  %1720 = vst.msk [vmem:[%s8 + $0xfc] sm:$0xf] %vm972, %v1592
  %v1721 = vld [vmem:[%s5] sm:$0x3]
  %v1722 = vld [vmem:[%s6] sm:$0x1]
  %v1724 = vlaneseq
  %v1725 = vshrl.u32 %v1724, 7
  %v1726 = vsub.s32 0, %v1725
  %v1727 = vrot.slane %v1722, %v1726
  %v1730 = vsel %vm359, %v1721, 0
  %1732 = vmatprep.subr.bf16.mxu0 0
  %1733 = vmatpush1.bf16.msra.mxu0 %v1730
  %1734 = vmatprep.subr.bf16.mxu0 0
  %1735 = vmatpush1.bf16.msra.mxu0 0
  %1736 = vmatprep.subr.bf16.mxu0 0
  %1737 = vmatpush1.bf16.msra.mxu0 0
  %1738 = vmatprep.subr.bf16.mxu0 0
  %1739 = vmatpush1.bf16.msra.mxu0 0
  %1740 = vmatprep.subr.bf16.mxu0 0
  %1741 = vmatpush1.bf16.msra.mxu0 0
  %1742 = vmatprep.subr.bf16.mxu0 0
  %1743 = vmatpush1.bf16.msra.mxu0 0
  %1744 = vmatprep.subr.bf16.mxu0 0
  %1745 = vmatpush1.bf16.msra.mxu0 0
  %1746 = vmatprep.subr.bf16.mxu0 0
  %1747 = vmatpush1.bf16.msra.mxu0 0
  %1748 = vmatprep.subr.bf16.mxu0 0
  %1749 = vmatpush1.bf16.msra.mxu0 0
  %1750 = vmatprep.subr.bf16.mxu0 0
  %1751 = vmatpush1.bf16.msra.mxu0 0
  %1752 = vmatprep.subr.bf16.mxu0 0
  %1753 = vmatpush1.bf16.msra.mxu0 0
  %1754 = vmatprep.subr.bf16.mxu0 0
  %1755 = vmatpush1.bf16.msra.mxu0 0
  %1756 = vmatprep.subr.bf16.mxu0 0
  %1757 = vmatpush1.bf16.msra.mxu0 0
  %1758 = vmatprep.subr.bf16.mxu0 0
  %1759 = vmatpush1.bf16.msra.mxu0 0
  %1760 = vmatprep.subr.bf16.mxu0 0
  %1761 = vmatpush1.bf16.msra.mxu0 0
  %1762 = vmatprep.subr.bf16.mxu0 0
  %1763 = vmatpush1.bf16.msra.mxu0 0
  %1764 = vmatprep.mubr.bf16.mxu0 0
  %1765 = vmatmul.mubr.bf16.gmra.mrb[0].mxu0 %v264
  %v1766 = vpop.f32.mrb[0].mxu0
  %v1767 = vadd.f32 %v1727, %v1766
  %v1768 = vpop.f32.mrb[0].mxu0
  %v1769 = vpop.f32.mrb[0].mxu0
  %v1770 = vadd.f32 %v1727, %v1769
  %v1771 = vpop.f32.mrb[0].mxu0
  %1772 = vmatprep.mubr.bf16.mxu0 0
  %1773 = vmatmul.mubr.bf16.gmra.mrb[0].mxu0 %v267
  %v1774 = vpop.f32.mrb[0].mxu0
  %v1775 = vadd.f32 %v1727, %v1774
  %v1776 = vpop.f32.mrb[0].mxu0
  %v1777 = vpop.f32.mrb[0].mxu0
  %v1778 = vadd.f32 %v1727, %v1777
  %v1779 = vpop.f32.mrb[0].mxu0
  %1780 = vmatprep.mubr.bf16.mxu0 0
  %1781 = vmatmul.mubr.bf16.gmra.mrb[0].mxu0 %v270
  %v1782 = vpop.f32.mrb[0].mxu0
  %v1783 = vadd.f32 %v1727, %v1782
  %v1784 = vpop.f32.mrb[0].mxu0
  %v1785 = vpop.f32.mrb[0].mxu0
  %v1786 = vadd.f32 %v1727, %v1785
  %v1787 = vpop.f32.mrb[0].mxu0
  %1788 = vmatprep.mubr.bf16.mxu0 0
  %1789 = vmatmul.mubr.bf16.gmra.mrb[0].mxu0 %v273
  %v1790 = vpop.f32.mrb[0].mxu0
  %v1791 = vadd.f32 %v1727, %v1790
  %v1792 = vpop.f32.mrb[0].mxu0
  %v1793 = vpop.f32.mrb[0].mxu0
  %v1794 = vadd.f32 %v1727, %v1793
  %v1795 = vpop.f32.mrb[0].mxu0
  %1796 = vmatprep.mubr.bf16.mxu0 0
  %1797 = vmatmul.mubr.bf16.gmra.mrb[0].mxu0 %v276
  %v1798 = vpop.f32.mrb[0].mxu0
  %v1799 = vadd.f32 %v1727, %v1798
  %v1800 = vpop.f32.mrb[0].mxu0
  %v1801 = vpop.f32.mrb[0].mxu0
  %v1802 = vadd.f32 %v1727, %v1801
  %v1803 = vpop.f32.mrb[0].mxu0
  %1804 = vmatprep.mubr.bf16.mxu0 0
  %1805 = vmatmul.mubr.bf16.gmra.mrb[0].mxu0 %v279
  %v1806 = vpop.f32.mrb[0].mxu0
  %v1807 = vadd.f32 %v1727, %v1806
  %v1808 = vpop.f32.mrb[0].mxu0
  %v1809 = vpop.f32.mrb[0].mxu0
  %v1810 = vadd.f32 %v1727, %v1809
  %v1811 = vpop.f32.mrb[0].mxu0
  %1812 = vmatprep.mubr.bf16.mxu0 0
  %1813 = vmatmul.mubr.bf16.gmra.mrb[0].mxu0 %v282
  %v1814 = vpop.f32.mrb[0].mxu0
  %v1815 = vadd.f32 %v1727, %v1814
  %v1816 = vpop.f32.mrb[0].mxu0
  %v1817 = vpop.f32.mrb[0].mxu0
  %v1818 = vadd.f32 %v1727, %v1817
  %v1819 = vpop.f32.mrb[0].mxu0
  %1820 = vmatprep.mubr.bf16.mxu0 0
  %1821 = vmatmul.mubr.bf16.gmra.mrb[0].mxu0 %v285
  %v1822 = vpop.f32.mrb[0].mxu0
  %v1823 = vadd.f32 %v1727, %v1822
  %v1824 = vpop.f32.mrb[0].mxu0
  %v1825 = vpop.f32.mrb[0].mxu0
  %v1826 = vadd.f32 %v1727, %v1825
  %v1827 = vpop.f32.mrb[0].mxu0
  %1828 = vmatprep.mubr.bf16.mxu0 0
  %1829 = vmatmul.mubr.bf16.gmra.mrb[0].mxu0 %v288
  %v1830 = vpop.f32.mrb[0].mxu0
  %v1831 = vadd.f32 %v1727, %v1830
  %v1832 = vpop.f32.mrb[0].mxu0
  %v1833 = vpop.f32.mrb[0].mxu0
  %v1834 = vadd.f32 %v1727, %v1833
  %v1835 = vpop.f32.mrb[0].mxu0
  %1836 = vmatprep.mubr.bf16.mxu0 0
  %1837 = vmatmul.mubr.bf16.gmra.mrb[0].mxu0 %v291
  %v1838 = vpop.f32.mrb[0].mxu0
  %v1839 = vadd.f32 %v1727, %v1838
  %v1840 = vpop.f32.mrb[0].mxu0
  %v1841 = vpop.f32.mrb[0].mxu0
  %v1842 = vadd.f32 %v1727, %v1841
  %v1843 = vpop.f32.mrb[0].mxu0
  %1844 = vmatprep.mubr.bf16.mxu0 0
  %1845 = vmatmul.mubr.bf16.gmra.mrb[0].mxu0 %v294
  %v1846 = vpop.f32.mrb[0].mxu0
  %v1847 = vadd.f32 %v1727, %v1846
  %v1848 = vpop.f32.mrb[0].mxu0
  %v1849 = vpop.f32.mrb[0].mxu0
  %v1850 = vadd.f32 %v1727, %v1849
  %v1851 = vpop.f32.mrb[0].mxu0
  %1852 = vmatprep.mubr.bf16.mxu0 0
  %1853 = vmatmul.mubr.bf16.gmra.mrb[0].mxu0 %v297
  %v1854 = vpop.f32.mrb[0].mxu0
  %v1855 = vadd.f32 %v1727, %v1854
  %v1856 = vpop.f32.mrb[0].mxu0
  %v1857 = vpop.f32.mrb[0].mxu0
  %v1858 = vadd.f32 %v1727, %v1857
  %v1859 = vpop.f32.mrb[0].mxu0
  %1860 = vmatprep.mubr.bf16.mxu0 0
  %1861 = vmatmul.mubr.bf16.gmra.mrb[0].mxu0 %v300
  %v1862 = vpop.f32.mrb[0].mxu0
  %v1863 = vadd.f32 %v1727, %v1862
  %v1864 = vpop.f32.mrb[0].mxu0
  %v1865 = vpop.f32.mrb[0].mxu0
  %v1866 = vadd.f32 %v1727, %v1865
  %v1867 = vpop.f32.mrb[0].mxu0
  %1868 = vmatprep.mubr.bf16.mxu0 0
  %1869 = vmatmul.mubr.bf16.gmra.mrb[0].mxu0 %v303
  %v1870 = vpop.f32.mrb[0].mxu0
  %v1871 = vadd.f32 %v1727, %v1870
  %v1872 = vpop.f32.mrb[0].mxu0
  %v1873 = vpop.f32.mrb[0].mxu0
  %v1874 = vadd.f32 %v1727, %v1873
  %v1875 = vpop.f32.mrb[0].mxu0
  %1876 = vmatprep.mubr.bf16.mxu0 0
  %1877 = vmatmul.mubr.bf16.gmra.mrb[0].mxu0 %v306
  %v1878 = vpop.f32.mrb[0].mxu0
  %v1879 = vadd.f32 %v1727, %v1878
  %v1880 = vpop.f32.mrb[0].mxu0
  %v1881 = vpop.f32.mrb[0].mxu0
  %v1882 = vadd.f32 %v1727, %v1881
  %v1883 = vpop.f32.mrb[0].mxu0
  %1884 = vmatprep.mubr.bf16.mxu0 0
  %1885 = vmatmul.mubr.bf16.gmra.mrb[0].mxu0 %v309
  %v1886 = vpop.f32.mrb[0].mxu0
  %v1887 = vadd.f32 %v1727, %v1886
  %v1888 = vpop.f32.mrb[0].mxu0
  %v1889 = vpop.f32.mrb[0].mxu0
  %v1890 = vadd.f32 %v1727, %v1889
  %v1891 = vpop.f32.mrb[0].mxu0
  %1892 = vmatprep.mubr.bf16.mxu0 0
  %1893 = vmatmul.mubr.bf16.gmra.mrb[0].mxu0 %v312
  %v1894 = vpop.f32.mrb[0].mxu0
  %v1895 = vadd.f32 %v1727, %v1894
  %v1896 = vpop.f32.mrb[0].mxu0
  %v1897 = vpop.f32.mrb[0].mxu0
  %v1898 = vadd.f32 %v1727, %v1897
  %v1899 = vpop.f32.mrb[0].mxu0
  %1900 = vmatprep.mubr.bf16.mxu0 0
  %1901 = vmatmul.mubr.bf16.gmra.mrb[0].mxu0 %v315
  %v1902 = vpop.f32.mrb[0].mxu0
  %v1903 = vadd.f32 %v1727, %v1902
  %v1904 = vpop.f32.mrb[0].mxu0
  %v1905 = vpop.f32.mrb[0].mxu0
  %v1906 = vadd.f32 %v1727, %v1905
  %v1907 = vpop.f32.mrb[0].mxu0
  %1908 = vmatprep.mubr.bf16.mxu0 0
  %1909 = vmatmul.mubr.bf16.gmra.mrb[0].mxu0 %v318
  %v1910 = vpop.f32.mrb[0].mxu0
  %v1911 = vadd.f32 %v1727, %v1910
  %v1912 = vpop.f32.mrb[0].mxu0
  %v1913 = vpop.f32.mrb[0].mxu0
  %v1914 = vadd.f32 %v1727, %v1913
  %v1915 = vpop.f32.mrb[0].mxu0
  %1916 = vmatprep.mubr.bf16.mxu0 0
  %1917 = vmatmul.mubr.bf16.gmra.mrb[0].mxu0 %v321
  %v1918 = vpop.f32.mrb[0].mxu0
  %v1919 = vadd.f32 %v1727, %v1918
  %v1920 = vpop.f32.mrb[0].mxu0
  %v1921 = vpop.f32.mrb[0].mxu0
  %v1922 = vadd.f32 %v1727, %v1921
  %v1923 = vpop.f32.mrb[0].mxu0
  %1924 = vmatprep.mubr.bf16.mxu0 0
  %1925 = vmatmul.mubr.bf16.gmra.mrb[0].mxu0 %v324
  %v1926 = vpop.f32.mrb[0].mxu0
  %v1927 = vadd.f32 %v1727, %v1926
  %v1928 = vpop.f32.mrb[0].mxu0
  %v1929 = vpop.f32.mrb[0].mxu0
  %v1930 = vadd.f32 %v1727, %v1929
  %v1931 = vpop.f32.mrb[0].mxu0
  %1932 = vmatprep.mubr.bf16.mxu0 0
  %1933 = vmatmul.mubr.bf16.gmra.mrb[0].mxu0 %v327
  %v1934 = vpop.f32.mrb[0].mxu0
  %v1935 = vadd.f32 %v1727, %v1934
  %v1936 = vpop.f32.mrb[0].mxu0
  %v1937 = vpop.f32.mrb[0].mxu0
  %v1938 = vadd.f32 %v1727, %v1937
  %v1939 = vpop.f32.mrb[0].mxu0
  %1940 = vmatprep.mubr.bf16.mxu0 0
  %1941 = vmatmul.mubr.bf16.gmra.mrb[0].mxu0 %v330
  %v1942 = vpop.f32.mrb[0].mxu0
  %v1943 = vadd.f32 %v1727, %v1942
  %v1944 = vpop.f32.mrb[0].mxu0
  %v1945 = vpop.f32.mrb[0].mxu0
  %v1946 = vadd.f32 %v1727, %v1945
  %v1947 = vpop.f32.mrb[0].mxu0
  %1948 = vmatprep.mubr.bf16.mxu0 0
  %1949 = vmatmul.mubr.bf16.gmra.mrb[0].mxu0 %v333
  %v1950 = vpop.f32.mrb[0].mxu0
  %v1951 = vadd.f32 %v1727, %v1950
  %v1952 = vpop.f32.mrb[0].mxu0
  %v1953 = vpop.f32.mrb[0].mxu0
  %v1954 = vadd.f32 %v1727, %v1953
  %v1955 = vpop.f32.mrb[0].mxu0
  %1956 = vmatprep.mubr.bf16.mxu0 0
  %1957 = vmatmul.mubr.bf16.gmra.mrb[0].mxu0 %v336
  %v1958 = vpop.f32.mrb[0].mxu0
  %v1959 = vadd.f32 %v1727, %v1958
  %v1960 = vpop.f32.mrb[0].mxu0
  %v1961 = vpop.f32.mrb[0].mxu0
  %v1962 = vadd.f32 %v1727, %v1961
  %v1963 = vpop.f32.mrb[0].mxu0
  %1964 = vmatprep.mubr.bf16.mxu0 0
  %1965 = vmatmul.mubr.bf16.gmra.mrb[0].mxu0 %v339
  %v1966 = vpop.f32.mrb[0].mxu0
  %v1967 = vadd.f32 %v1727, %v1966
  %v1968 = vpop.f32.mrb[0].mxu0
  %v1969 = vpop.f32.mrb[0].mxu0
  %v1970 = vadd.f32 %v1727, %v1969
  %v1971 = vpop.f32.mrb[0].mxu0
  %1972 = vmatprep.mubr.bf16.mxu0 0
  %1973 = vmatmul.mubr.bf16.gmra.mrb[0].mxu0 %v342
  %v1974 = vpop.f32.mrb[0].mxu0
  %v1975 = vadd.f32 %v1727, %v1974
  %v1976 = vpop.f32.mrb[0].mxu0
  %v1977 = vpop.f32.mrb[0].mxu0
  %v1978 = vadd.f32 %v1727, %v1977
  %v1979 = vpop.f32.mrb[0].mxu0
  %1980 = vmatprep.mubr.bf16.mxu0 0
  %1981 = vmatmul.mubr.bf16.gmra.mrb[0].mxu0 %v345
  %v1982 = vpop.f32.mrb[0].mxu0
  %v1983 = vadd.f32 %v1727, %v1982
  %v1984 = vpop.f32.mrb[0].mxu0
  %v1985 = vpop.f32.mrb[0].mxu0
  %v1986 = vadd.f32 %v1727, %v1985
  %v1987 = vpop.f32.mrb[0].mxu0
  %1988 = vmatprep.mubr.bf16.mxu0 0
  %1989 = vmatmul.mubr.bf16.gmra.mrb[0].mxu0 %v348
  %v1990 = vpop.f32.mrb[0].mxu0
  %v1991 = vadd.f32 %v1727, %v1990
  %v1992 = vpop.f32.mrb[0].mxu0
  %v1993 = vpop.f32.mrb[0].mxu0
  %v1994 = vadd.f32 %v1727, %v1993
  %v1995 = vpop.f32.mrb[0].mxu0
  %1996 = vmatprep.mubr.bf16.mxu0 0
  %1997 = vmatmul.mubr.bf16.gmra.mrb[0].mxu0 %v351
  %v1998 = vpop.f32.mrb[0].mxu0
  %v1999 = vadd.f32 %v1727, %v1998
  %v2000 = vpop.f32.mrb[0].mxu0
  %v2001 = vpop.f32.mrb[0].mxu0
  %v2002 = vadd.f32 %v1727, %v2001
  %v2003 = vpop.f32.mrb[0].mxu0
  %2004 = vmatprep.mubr.bf16.mxu0 0
  %2005 = vmatmul.mubr.bf16.gmra.mrb[0].mxu0 %v354
  %v2006 = vpop.f32.mrb[0].mxu0
  %v2007 = vadd.f32 %v1727, %v2006
  %v2008 = vpop.f32.mrb[0].mxu0
  %v2009 = vpop.f32.mrb[0].mxu0
  %v2010 = vadd.f32 %v1727, %v2009
  %v2011 = vpop.f32.mrb[0].mxu0
  %2012 = vmatprep.mubr.bf16.mxu0 0
  %2013 = vmatmul.mubr.bf16.gmra.mrb[0].mxu0 %v357
  %v2014 = vpop.f32.mrb[0].mxu0
  %v2015 = vadd.f32 %v1727, %v2014
  %v2016 = vpop.f32.mrb[0].mxu0
  %v2017 = vpop.f32.mrb[0].mxu0
  %v2018 = vadd.f32 %v1727, %v2017
  %v2019 = vpop.f32.mrb[0].mxu0
  %2020 = vdwg.mxu0
  %v2021 = vmax.f32 %v1767, 0.0
  %v2022 = vmax.f32 %v1770, 0.0
  %v2023 = vmax.f32 %v1775, 0.0
  %v2024 = vmax.f32 %v1778, 0.0
  %v2025 = vmax.f32 %v1783, 0.0
  %v2026 = vmax.f32 %v1786, 0.0
  %v2027 = vmax.f32 %v1791, 0.0
  %v2028 = vmax.f32 %v1794, 0.0
  %v2029 = vmax.f32 %v1799, 0.0
  %v2030 = vmax.f32 %v1802, 0.0
  %v2031 = vmax.f32 %v1807, 0.0
  %v2032 = vmax.f32 %v1810, 0.0
  %v2033 = vmax.f32 %v1815, 0.0
  %v2034 = vmax.f32 %v1818, 0.0
  %v2035 = vmax.f32 %v1823, 0.0
  %v2036 = vmax.f32 %v1826, 0.0
  %v2037 = vmax.f32 %v1831, 0.0
  %v2038 = vmax.f32 %v1834, 0.0
  %v2039 = vmax.f32 %v1839, 0.0
  %v2040 = vmax.f32 %v1842, 0.0
  %v2041 = vmax.f32 %v1847, 0.0
  %v2042 = vmax.f32 %v1850, 0.0
  %v2043 = vmax.f32 %v1855, 0.0
  %v2044 = vmax.f32 %v1858, 0.0
  %v2045 = vmax.f32 %v1863, 0.0
  %v2046 = vmax.f32 %v1866, 0.0
  %v2047 = vmax.f32 %v1871, 0.0
  %v2048 = vmax.f32 %v1874, 0.0
  %v2049 = vmax.f32 %v1879, 0.0
  %v2050 = vmax.f32 %v1882, 0.0
  %v2051 = vmax.f32 %v1887, 0.0
  %v2052 = vmax.f32 %v1890, 0.0
  %v2053 = vmax.f32 %v1895, 0.0
  %v2054 = vmax.f32 %v1898, 0.0
  %v2055 = vmax.f32 %v1903, 0.0
  %v2056 = vmax.f32 %v1906, 0.0
  %v2057 = vmax.f32 %v1911, 0.0
  %v2058 = vmax.f32 %v1914, 0.0
  %v2059 = vmax.f32 %v1919, 0.0
  %v2060 = vmax.f32 %v1922, 0.0
  %v2061 = vmax.f32 %v1927, 0.0
  %v2062 = vmax.f32 %v1930, 0.0
  %v2063 = vmax.f32 %v1935, 0.0
  %v2064 = vmax.f32 %v1938, 0.0
  %v2065 = vmax.f32 %v1943, 0.0
  %v2066 = vmax.f32 %v1946, 0.0
  %v2067 = vmax.f32 %v1951, 0.0
  %v2068 = vmax.f32 %v1954, 0.0
  %v2069 = vmax.f32 %v1959, 0.0
  %v2070 = vmax.f32 %v1962, 0.0
  %v2071 = vmax.f32 %v1967, 0.0
  %v2072 = vmax.f32 %v1970, 0.0
  %v2073 = vmax.f32 %v1975, 0.0
  %v2074 = vmax.f32 %v1978, 0.0
  %v2075 = vmax.f32 %v1983, 0.0
  %v2076 = vmax.f32 %v1986, 0.0
  %v2077 = vmax.f32 %v1991, 0.0
  %v2078 = vmax.f32 %v1994, 0.0
  %v2079 = vmax.f32 %v1999, 0.0
  %v2080 = vmax.f32 %v2002, 0.0
  %v2081 = vmax.f32 %v2007, 0.0
  %v2082 = vmax.f32 %v2010, 0.0
  %v2083 = vmax.f32 %v2015, 0.0
  %v2084 = vmax.f32 %v2018, 0.0
  %v2085 = vpack.c.bf16 %v2022, %v2021
  %v2086 = vpack.c.bf16 %v2024, %v2023
  %v2087 = vpack.c.bf16 %v2026, %v2025
  %v2088 = vpack.c.bf16 %v2028, %v2027
  %v2089 = vpack.c.bf16 %v2030, %v2029
  %v2090 = vpack.c.bf16 %v2032, %v2031
  %v2091 = vpack.c.bf16 %v2034, %v2033
  %v2092 = vpack.c.bf16 %v2036, %v2035
  %v2093 = vpack.c.bf16 %v2038, %v2037
  %v2094 = vpack.c.bf16 %v2040, %v2039
  %v2095 = vpack.c.bf16 %v2042, %v2041
  %v2096 = vpack.c.bf16 %v2044, %v2043
  %v2097 = vpack.c.bf16 %v2046, %v2045
  %v2098 = vpack.c.bf16 %v2048, %v2047
  %v2099 = vpack.c.bf16 %v2050, %v2049
  %v2100 = vpack.c.bf16 %v2052, %v2051
  %v2101 = vpack.c.bf16 %v2054, %v2053
  %v2102 = vpack.c.bf16 %v2056, %v2055
  %v2103 = vpack.c.bf16 %v2058, %v2057
  %v2104 = vpack.c.bf16 %v2060, %v2059
  %v2105 = vpack.c.bf16 %v2062, %v2061
  %v2106 = vpack.c.bf16 %v2064, %v2063
  %v2107 = vpack.c.bf16 %v2066, %v2065
  %v2108 = vpack.c.bf16 %v2068, %v2067
  %v2109 = vpack.c.bf16 %v2070, %v2069
  %v2110 = vpack.c.bf16 %v2072, %v2071
  %v2111 = vpack.c.bf16 %v2074, %v2073
  %v2112 = vpack.c.bf16 %v2076, %v2075
  %v2113 = vpack.c.bf16 %v2078, %v2077
  %v2114 = vpack.c.bf16 %v2080, %v2079
  %v2115 = vpack.c.bf16 %v2082, %v2081
  %v2116 = vpack.c.bf16 %v2084, %v2083
  %v2149 = vunpack.c.l.b16 %v2085
  %v2150 = vunpack.c.h.b16 %v2085
  %v2151 = vunpack.c.l.b16 %v2086
  %v2152 = vunpack.c.h.b16 %v2086
  %v2153 = vunpack.c.l.b16 %v2087
  %v2154 = vunpack.c.h.b16 %v2087
  %v2155 = vunpack.c.l.b16 %v2088
  %v2156 = vunpack.c.h.b16 %v2088
  %v2157 = vunpack.c.l.b16 %v2089
  %v2158 = vunpack.c.h.b16 %v2089
  %v2159 = vunpack.c.l.b16 %v2090
  %v2160 = vunpack.c.h.b16 %v2090
  %v2161 = vunpack.c.l.b16 %v2091
  %v2162 = vunpack.c.h.b16 %v2091
  %v2163 = vunpack.c.l.b16 %v2092
  %v2164 = vunpack.c.h.b16 %v2092
  %v2165 = vunpack.c.l.b16 %v2093
  %v2166 = vunpack.c.h.b16 %v2093
  %v2167 = vunpack.c.l.b16 %v2094
  %v2168 = vunpack.c.h.b16 %v2094
  %v2169 = vunpack.c.l.b16 %v2095
  %v2170 = vunpack.c.h.b16 %v2095
  %v2171 = vunpack.c.l.b16 %v2096
  %v2172 = vunpack.c.h.b16 %v2096
  %v2173 = vunpack.c.l.b16 %v2097
  %v2174 = vunpack.c.h.b16 %v2097
  %v2175 = vunpack.c.l.b16 %v2098
  %v2176 = vunpack.c.h.b16 %v2098
  %v2177 = vunpack.c.l.b16 %v2099
  %v2178 = vunpack.c.h.b16 %v2099
  %v2179 = vunpack.c.l.b16 %v2100
  %v2180 = vunpack.c.h.b16 %v2100
  %v2181 = vunpack.c.l.b16 %v2101
  %v2182 = vunpack.c.h.b16 %v2101
  %v2183 = vunpack.c.l.b16 %v2102
  %v2184 = vunpack.c.h.b16 %v2102
  %v2185 = vunpack.c.l.b16 %v2103
  %v2186 = vunpack.c.h.b16 %v2103
  %v2187 = vunpack.c.l.b16 %v2104
  %v2188 = vunpack.c.h.b16 %v2104
  %v2189 = vunpack.c.l.b16 %v2105
  %v2190 = vunpack.c.h.b16 %v2105
  %v2191 = vunpack.c.l.b16 %v2106
  %v2192 = vunpack.c.h.b16 %v2106
  %v2193 = vunpack.c.l.b16 %v2107
  %v2194 = vunpack.c.h.b16 %v2107
  %v2195 = vunpack.c.l.b16 %v2108
  %v2196 = vunpack.c.h.b16 %v2108
  %v2197 = vunpack.c.l.b16 %v2109
  %v2198 = vunpack.c.h.b16 %v2109
  %v2199 = vunpack.c.l.b16 %v2110
  %v2200 = vunpack.c.h.b16 %v2110
  %v2201 = vunpack.c.l.b16 %v2111
  %v2202 = vunpack.c.h.b16 %v2111
  %v2203 = vunpack.c.l.b16 %v2112
  %v2204 = vunpack.c.h.b16 %v2112
  %v2205 = vunpack.c.l.b16 %v2113
  %v2206 = vunpack.c.h.b16 %v2113
  %v2207 = vunpack.c.l.b16 %v2114
  %v2208 = vunpack.c.h.b16 %v2114
  %v2209 = vunpack.c.l.b16 %v2115
  %v2210 = vunpack.c.h.b16 %v2115
  %v2211 = vunpack.c.l.b16 %v2116
  %v2212 = vunpack.c.h.b16 %v2116
  %v2213 = vpack.c.b16 %v2149, %v2149
  %v2214 = vpack.c.b16 %v2150, %v2150
  %v2215 = vpack.c.b16 %v2151, %v2151
  %v2216 = vpack.c.b16 %v2152, %v2152
  %v2217 = vpack.c.b16 %v2153, %v2153
  %v2218 = vpack.c.b16 %v2154, %v2154
  %v2219 = vpack.c.b16 %v2155, %v2155
  %v2220 = vpack.c.b16 %v2156, %v2156
  %v2221 = vpack.c.b16 %v2157, %v2157
  %v2222 = vpack.c.b16 %v2158, %v2158
  %v2223 = vpack.c.b16 %v2159, %v2159
  %v2224 = vpack.c.b16 %v2160, %v2160
  %v2225 = vpack.c.b16 %v2161, %v2161
  %v2226 = vpack.c.b16 %v2162, %v2162
  %v2227 = vpack.c.b16 %v2163, %v2163
  %v2228 = vpack.c.b16 %v2164, %v2164
  %v2229 = vpack.c.b16 %v2165, %v2165
  %v2230 = vpack.c.b16 %v2166, %v2166
  %v2231 = vpack.c.b16 %v2167, %v2167
  %v2232 = vpack.c.b16 %v2168, %v2168
  %v2233 = vpack.c.b16 %v2169, %v2169
  %v2234 = vpack.c.b16 %v2170, %v2170
  %v2235 = vpack.c.b16 %v2171, %v2171
  %v2236 = vpack.c.b16 %v2172, %v2172
  %v2237 = vpack.c.b16 %v2173, %v2173
  %v2238 = vpack.c.b16 %v2174, %v2174
  %v2239 = vpack.c.b16 %v2175, %v2175
  %v2240 = vpack.c.b16 %v2176, %v2176
  %v2241 = vpack.c.b16 %v2177, %v2177
  %v2242 = vpack.c.b16 %v2178, %v2178
  %v2243 = vpack.c.b16 %v2179, %v2179
  %v2244 = vpack.c.b16 %v2180, %v2180
  %v2245 = vpack.c.b16 %v2181, %v2181
  %v2246 = vpack.c.b16 %v2182, %v2182
  %v2247 = vpack.c.b16 %v2183, %v2183
  %v2248 = vpack.c.b16 %v2184, %v2184
  %v2249 = vpack.c.b16 %v2185, %v2185
  %v2250 = vpack.c.b16 %v2186, %v2186
  %v2251 = vpack.c.b16 %v2187, %v2187
  %v2252 = vpack.c.b16 %v2188, %v2188
  %v2253 = vpack.c.b16 %v2189, %v2189
  %v2254 = vpack.c.b16 %v2190, %v2190
  %v2255 = vpack.c.b16 %v2191, %v2191
  %v2256 = vpack.c.b16 %v2192, %v2192
  %v2257 = vpack.c.b16 %v2193, %v2193
  %v2258 = vpack.c.b16 %v2194, %v2194
  %v2259 = vpack.c.b16 %v2195, %v2195
  %v2260 = vpack.c.b16 %v2196, %v2196
  %v2261 = vpack.c.b16 %v2197, %v2197
  %v2262 = vpack.c.b16 %v2198, %v2198
  %v2263 = vpack.c.b16 %v2199, %v2199
  %v2264 = vpack.c.b16 %v2200, %v2200
  %v2265 = vpack.c.b16 %v2201, %v2201
  %v2266 = vpack.c.b16 %v2202, %v2202
  %v2267 = vpack.c.b16 %v2203, %v2203
  %v2268 = vpack.c.b16 %v2204, %v2204
  %v2269 = vpack.c.b16 %v2205, %v2205
  %v2270 = vpack.c.b16 %v2206, %v2206
  %v2271 = vpack.c.b16 %v2207, %v2207
  %v2272 = vpack.c.b16 %v2208, %v2208
  %v2273 = vpack.c.b16 %v2209, %v2209
  %v2274 = vpack.c.b16 %v2210, %v2210
  %v2275 = vpack.c.b16 %v2211, %v2211
  %v2276 = vpack.c.b16 %v2212, %v2212
  %2341 = vst.msk [vmem:[%s9] sm:$0xf] %vm972, %v2213
  %2342 = vst.msk [vmem:[%s9 + $0x4] sm:$0xf] %vm972, %v2214
  %2343 = vst.msk [vmem:[%s9 + $0x8] sm:$0xf] %vm972, %v2215
  %2344 = vst.msk [vmem:[%s9 + $0xc] sm:$0xf] %vm972, %v2216
  %2345 = vst.msk [vmem:[%s9 + $0x10] sm:$0xf] %vm972, %v2217
  %2346 = vst.msk [vmem:[%s9 + $0x14] sm:$0xf] %vm972, %v2218
  %2347 = vst.msk [vmem:[%s9 + $0x18] sm:$0xf] %vm972, %v2219
  %2348 = vst.msk [vmem:[%s9 + $0x1c] sm:$0xf] %vm972, %v2220
  %2349 = vst.msk [vmem:[%s9 + $0x20] sm:$0xf] %vm972, %v2221
  %2350 = vst.msk [vmem:[%s9 + $0x24] sm:$0xf] %vm972, %v2222
  %2351 = vst.msk [vmem:[%s9 + $0x28] sm:$0xf] %vm972, %v2223
  %2352 = vst.msk [vmem:[%s9 + $0x2c] sm:$0xf] %vm972, %v2224
  %2353 = vst.msk [vmem:[%s9 + $0x30] sm:$0xf] %vm972, %v2225
  %2354 = vst.msk [vmem:[%s9 + $0x34] sm:$0xf] %vm972, %v2226
  %2355 = vst.msk [vmem:[%s9 + $0x38] sm:$0xf] %vm972, %v2227
  %2356 = vst.msk [vmem:[%s9 + $0x3c] sm:$0xf] %vm972, %v2228
  %2357 = vst.msk [vmem:[%s9 + $0x40] sm:$0xf] %vm972, %v2229
  %2358 = vst.msk [vmem:[%s9 + $0x44] sm:$0xf] %vm972, %v2230
  %2359 = vst.msk [vmem:[%s9 + $0x48] sm:$0xf] %vm972, %v2231
  %2360 = vst.msk [vmem:[%s9 + $0x4c] sm:$0xf] %vm972, %v2232
  %2361 = vst.msk [vmem:[%s9 + $0x50] sm:$0xf] %vm972, %v2233
  %2362 = vst.msk [vmem:[%s9 + $0x54] sm:$0xf] %vm972, %v2234
  %2363 = vst.msk [vmem:[%s9 + $0x58] sm:$0xf] %vm972, %v2235
  %2364 = vst.msk [vmem:[%s9 + $0x5c] sm:$0xf] %vm972, %v2236
  %2365 = vst.msk [vmem:[%s9 + $0x60] sm:$0xf] %vm972, %v2237
  %2366 = vst.msk [vmem:[%s9 + $0x64] sm:$0xf] %vm972, %v2238
  %2367 = vst.msk [vmem:[%s9 + $0x68] sm:$0xf] %vm972, %v2239
  %2368 = vst.msk [vmem:[%s9 + $0x6c] sm:$0xf] %vm972, %v2240
  %2369 = vst.msk [vmem:[%s9 + $0x70] sm:$0xf] %vm972, %v2241
  %2370 = vst.msk [vmem:[%s9 + $0x74] sm:$0xf] %vm972, %v2242
  %2371 = vst.msk [vmem:[%s9 + $0x78] sm:$0xf] %vm972, %v2243
  %2372 = vst.msk [vmem:[%s9 + $0x7c] sm:$0xf] %vm972, %v2244
  %2373 = vst.msk [vmem:[%s9 + $0x80] sm:$0xf] %vm972, %v2245
  %2374 = vst.msk [vmem:[%s9 + $0x84] sm:$0xf] %vm972, %v2246
  %2375 = vst.msk [vmem:[%s9 + $0x88] sm:$0xf] %vm972, %v2247
  %2376 = vst.msk [vmem:[%s9 + $0x8c] sm:$0xf] %vm972, %v2248
  %2377 = vst.msk [vmem:[%s9 + $0x90] sm:$0xf] %vm972, %v2249
  %2378 = vst.msk [vmem:[%s9 + $0x94] sm:$0xf] %vm972, %v2250
  %2379 = vst.msk [vmem:[%s9 + $0x98] sm:$0xf] %vm972, %v2251
  %2380 = vst.msk [vmem:[%s9 + $0x9c] sm:$0xf] %vm972, %v2252
  %2381 = vst.msk [vmem:[%s9 + $0xa0] sm:$0xf] %vm972, %v2253
  %2382 = vst.msk [vmem:[%s9 + $0xa4] sm:$0xf] %vm972, %v2254
  %2383 = vst.msk [vmem:[%s9 + $0xa8] sm:$0xf] %vm972, %v2255
  %2384 = vst.msk [vmem:[%s9 + $0xac] sm:$0xf] %vm972, %v2256
  %2385 = vst.msk [vmem:[%s9 + $0xb0] sm:$0xf] %vm972, %v2257
  %2386 = vst.msk [vmem:[%s9 + $0xb4] sm:$0xf] %vm972, %v2258
  %2387 = vst.msk [vmem:[%s9 + $0xb8] sm:$0xf] %vm972, %v2259
  %2388 = vst.msk [vmem:[%s9 + $0xbc] sm:$0xf] %vm972, %v2260
  %2389 = vst.msk [vmem:[%s9 + $0xc0] sm:$0xf] %vm972, %v2261
  %2390 = vst.msk [vmem:[%s9 + $0xc4] sm:$0xf] %vm972, %v2262
  %2391 = vst.msk [vmem:[%s9 + $0xc8] sm:$0xf] %vm972, %v2263
  %2392 = vst.msk [vmem:[%s9 + $0xcc] sm:$0xf] %vm972, %v2264
  %2393 = vst.msk [vmem:[%s9 + $0xd0] sm:$0xf] %vm972, %v2265
  %2394 = vst.msk [vmem:[%s9 + $0xd4] sm:$0xf] %vm972, %v2266
  %2395 = vst.msk [vmem:[%s9 + $0xd8] sm:$0xf] %vm972, %v2267
  %2396 = vst.msk [vmem:[%s9 + $0xdc] sm:$0xf] %vm972, %v2268
  %2397 = vst.msk [vmem:[%s9 + $0xe0] sm:$0xf] %vm972, %v2269
  %2398 = vst.msk [vmem:[%s9 + $0xe4] sm:$0xf] %vm972, %v2270
  %2399 = vst.msk [vmem:[%s9 + $0xe8] sm:$0xf] %vm972, %v2271
  %2400 = vst.msk [vmem:[%s9 + $0xec] sm:$0xf] %vm972, %v2272
  %2401 = vst.msk [vmem:[%s9 + $0xf0] sm:$0xf] %vm972, %v2273
  %2402 = vst.msk [vmem:[%s9 + $0xf4] sm:$0xf] %vm972, %v2274
  %2403 = vst.msk [vmem:[%s9 + $0xf8] sm:$0xf] %vm972, %v2275
  %2404 = vst.msk [vmem:[%s9 + $0xfc] sm:$0xf] %vm972, %v2276
  // Predicated region
  $region30: #{tpu_custom_call.1} parent=0 // pred_check
    _
  $region31: #{tpu_custom_call.1} parent=0 // pred_check_branch
    %2406 = sbr.rel (0) target = $region33
  $region32: #{tpu_custom_call.1} parent=0 // pred_region
    _
  $region33: #{tpu_custom_call.1} parent=0 // pred_fallthru
    _
  // Predicated region
  $region34: #{tpu_custom_call.1} parent=0 // pred_check
    _
  $region35: #{tpu_custom_call.1} parent=0 // pred_check_branch
    %2408 = sbr.rel (0) target = $region37
  $region36: #{tpu_custom_call.1} parent=0 // pred_region
    _
  $region37: #{tpu_custom_call.1} parent=0 // pred_fallthru
    _
  // Predicated region
  $region38: #{tpu_custom_call.1} parent=0 // pred_check
    _
  $region39: #{tpu_custom_call.1} parent=0 // pred_check_branch
    %2410 = sbr.rel (0) target = $region41
  $region40: #{tpu_custom_call.1} parent=0 // pred_region
    _
  $region41: #{tpu_custom_call.1} parent=0 // pred_fallthru
    _
  // Predicated region
  $region42: #{tpu_custom_call.1} parent=0 // pred_check
    _
  $region43: #{tpu_custom_call.1} parent=0 // pred_check_branch
    %2412 = sbr.rel (0) target = $region45
  $region44: #{tpu_custom_call.1} parent=0 // pred_region
    _
  $region45: #{tpu_custom_call.1} parent=0 // pred_fallthru
    _
  // Predicated region
  $region46: #{tpu_custom_call.1} parent=0 // pred_check
    _
  $region47: #{tpu_custom_call.1} parent=0 // pred_check_branch
    %2414 = sbr.rel (0) target = $region49
  $region48: #{tpu_custom_call.1} parent=0 // pred_region
    _
  $region49: #{tpu_custom_call.1} parent=0 // pred_fallthru
    _
  // Predicated region
  $region50: #{tpu_custom_call.1} parent=0 // pred_check
    _
  $region51: #{tpu_custom_call.1} parent=0 // pred_check_branch
    %2416 = sbr.rel (0) target = $region53
  $region52: #{tpu_custom_call.1} parent=0 // pred_region
    _
  $region53: #{tpu_custom_call.1} parent=0 // pred_fallthru
    _

</llo_original>
